<compile_context>
chip_gen: v6e
topology: v6e:2x2x1
jax: 0.10.0
libtpu: 0.0.40
codegen_flags: <defaults>
</compile_context>

<pallas_src>
from functools import partial

import jax
import jax.numpy as jnp
from jax.experimental import pallas as pl
from jax.experimental.pallas import tpu as pltpu

_EPS = 1e-5                      # default eps of nn.LayerNorm and nn.BatchNorm2d
_VMEM_LIMIT = 32 * 1024 * 1024   # explicit scoped-VMEM limit (safe on v5e/v6e/v7x)
_TARGET_BLOCK_BYTES = 1 << 20    # ~1 MiB blocks: HBM-roofline friendly tile size
_MAX_BLOCK_ROWS = 4096


def _round_up(n, m):
    return ((n + m - 1) // m) * m


def _cdiv(a, b):
    return (a + b - 1) // b


def _pick_block_rows(n_rows, row_bytes):
    """Largest multiple-of-8 row block, ~<= 1 MiB, <= round_up(n_rows, 8)."""
    cap = min(_MAX_BLOCK_ROWS, max(8, _TARGET_BLOCK_BYTES // max(row_bytes, 1)))
    cap = max(8, (cap // 8) * 8)
    return min(cap, _round_up(max(n_rows, 1), 8))


# ----------------------------------------------------------------------------
# Training pass 1: column (per-channel) statistics, accumulator pattern.
#   x_ref:   (block_rows, D) tile of the zero-padded [N_pad, D] slab
#   bn_g/bn_b: (1, D) BatchNorm affine
#   n_ref:   (1,) SMEM float32 = true element count N (padding rows are zero)
# outputs (all (1, D), same block index across the grid -> VMEM-resident):
#   scale_ref/bias_ref: folded BN params  scale = g*rsqrt(var+eps),
#                                         bias  = b - mean*scale
#   bmean_ref/bvar_ref: batch mean / biased batch var (for running stats)
# ----------------------------------------------------------------------------
def _ptnorm_stats_kernel(x_ref, bn_g_ref, bn_b_ref, n_ref,
                         scale_ref, bias_ref, bmean_ref, bvar_ref):
    i = pl.program_id(0)

    @pl.when(i == 0)
    def _():
        bmean_ref[...] = jnp.zeros_like(bmean_ref)
        bvar_ref[...] = jnp.zeros_like(bvar_ref)
        scale_ref[...] = jnp.zeros_like(scale_ref)
        bias_ref[...] = jnp.zeros_like(bias_ref)

    x = x_ref[...].astype(jnp.float32)
    # One sweep: accumulate sum and sum-of-squares (var = E[x^2] - E[x]^2).
    bmean_ref[...] += jnp.sum(x, axis=0, keepdims=True)
    bvar_ref[...] += jnp.sum(x * x, axis=0, keepdims=True)

    @pl.when(i == pl.num_programs(0) - 1)
    def _():
        inv_n = 1.0 / n_ref[0]
        mu = bmean_ref[...] * inv_n
        var = jnp.maximum(bvar_ref[...] * inv_n - mu * mu, 0.0)
        bmean_ref[...] = mu
        bvar_ref[...] = var
        scale = bn_g_ref[...] * jax.lax.rsqrt(var + _EPS)
        scale_ref[...] = scale
        bias_ref[...] = bn_b_ref[...] - mu * scale


# ----------------------------------------------------------------------------
# Training pass 2: fused per-row LayerNorm + folded BatchNorm + lamda blend.
# ----------------------------------------------------------------------------
def _ptnorm_apply_kernel(x_ref, ln_g_ref, ln_b_ref, bn_scale_ref, bn_bias_ref,
                         lam_ref, y_ref):
    x = x_ref[...].astype(jnp.float32)

    # LayerNorm over feature dim D (per row).
    mu = jnp.mean(x, axis=1, keepdims=True)
    xc = x - mu
    var = jnp.mean(xc * xc, axis=1, keepdims=True)
    x_ln = xc * jax.lax.rsqrt(var + _EPS) * ln_g_ref[...] + ln_b_ref[...]

    # BatchNorm with pre-folded batch-stat scale/bias.
    x_bn = x * bn_scale_ref[...] + bn_bias_ref[...]

    lam = lam_ref[0]
    y_ref[...] = (x_bn + lam * (x_ln - x_bn)).astype(y_ref.dtype)


# ----------------------------------------------------------------------------
# Eval kernel: y = x*scale + bias (running stats folded in wrapper), lane-dense.
# ----------------------------------------------------------------------------
def _ptnorm_eval_kernel(x_ref, scale_ref, bias_ref, y_ref):
    x = x_ref[...].astype(jnp.float32)
    y_ref[...] = (x * scale_ref[...] + bias_ref[...]).astype(y_ref.dtype)


@partial(jax.jit, static_argnames=("block_rows",))
def _ptnorm_train_call(xf, ln_g, ln_b, bn_g, bn_b, lam_arr, n_arr, block_rows):
    N, D = xf.shape
    n_pad = _round_up(N, block_rows)
    xf_p = jnp.pad(xf, ((0, n_pad - N), (0, 0))) if n_pad != N else xf
    grid = (n_pad // block_rows,)

    row_spec = pl.BlockSpec((block_rows, D), lambda i: (i, 0))
    vec_spec = pl.BlockSpec((1, D), lambda i: (0, 0))
    smem_spec = pl.BlockSpec(memory_space=pltpu.MemorySpace.SMEM)

    # ----- pass 1: batch stats (reduction axis -> "arbitrary") -----
    bn_scale, bn_bias, bmean, bvar = pl.pallas_call(
        _ptnorm_stats_kernel,
        out_shape=(jax.ShapeDtypeStruct((1, D), jnp.float32),) * 4,
        grid=grid,
        in_specs=[row_spec, vec_spec, vec_spec, smem_spec],
        out_specs=(vec_spec, vec_spec, vec_spec, vec_spec),
        compiler_params=pltpu.CompilerParams(
            dimension_semantics=("arbitrary",),
            vmem_limit_bytes=_VMEM_LIMIT),
    )(xf_p, bn_g, bn_b, n_arr)

    # ----- pass 2: fused LN + BN + blend (row axis -> "parallel") -----
    y_p = pl.pallas_call(
        _ptnorm_apply_kernel,
        out_shape=jax.ShapeDtypeStruct((n_pad, D), xf.dtype),
        grid=grid,
        in_specs=[row_spec, vec_spec, vec_spec, vec_spec, vec_spec, smem_spec],
        out_specs=row_spec,
        compiler_params=pltpu.CompilerParams(
            dimension_semantics=("parallel",),
            vmem_limit_bytes=_VMEM_LIMIT),
    )(xf_p, ln_g, ln_b, bn_scale, bn_bias, lam_arr)

    y = y_p[:N] if n_pad != N else y_p
    return y, bmean, bvar


@partial(jax.jit, static_argnames=("block_rows", "pack"))
def _ptnorm_eval_call(xf, bn_g, bn_b, rmean, rvar, block_rows, pack):
    N, D = xf.shape
    W = D * pack

    # Fold running stats + affine into scale/bias once (tiny (1,D) precompute).
    scale = bn_g * jax.lax.rsqrt(rvar + _EPS)
    bias = bn_b - rmean * scale

    rows = _cdiv(N, pack)
    rows_pad = _round_up(max(rows, 1), block_rows)
    n_pad = rows_pad * pack
    xf_p = jnp.pad(xf, ((0, n_pad - N), (0, 0))) if n_pad != N else xf

    # Lane-dense repack: (N_pad, D) -> (rows_pad, D*pack); params tiled to match.
    x2 = xf_p.reshape(rows_pad, W)
    scale_w = jnp.tile(scale, (1, pack))
    bias_w = jnp.tile(bias, (1, pack))

    y2 = pl.pallas_call(
        _ptnorm_eval_kernel,
        out_shape=jax.ShapeDtypeStruct((rows_pad, W), xf.dtype),
        grid=(rows_pad // block_rows,),
        in_specs=[
            pl.BlockSpec((block_rows, W), lambda i: (i, 0)),
            pl.BlockSpec((1, W), lambda i: (0, 0)),
            pl.BlockSpec((1, W), lambda i: (0, 0)),
        ],
        out_specs=pl.BlockSpec((block_rows, W), lambda i: (i, 0)),
        compiler_params=pltpu.CompilerParams(
            dimension_semantics=("parallel",),
            vmem_limit_bytes=_VMEM_LIMIT),
    )(x2, scale_w, bias_w)

    y = y2.reshape(n_pad, D)
    return y[:N] if n_pad != N else y


class PTNorm:
    """JAX/Pallas port of PTNorm (input layout [T, B, L, D])."""

    def __init__(self, dim, T, step, warm=0, r0=1.0):
        self.dim = dim
        self.T = T
        self.warm = int(warm)
        self.iter = int(step)
        self.total_step = int(step)
        self.r0 = float(r0)
        self.momentum = 0.1          # nn.BatchNorm2d default
        self.training = True
        # norm1 = LN(dim): LayerNorm affine params
        self.ln_gamma = jnp.ones((1, dim), jnp.float32)
        self.ln_beta = jnp.zeros((1, dim), jnp.float32)
        # norm2 = BN(dim): BatchNorm2d affine params + running stats
        self.bn_gamma = jnp.ones((1, dim), jnp.float32)
        self.bn_beta = jnp.zeros((1, dim), jnp.float32)
        self.running_mean = jnp.zeros((1, dim), jnp.float32)
        self.running_var = jnp.ones((1, dim), jnp.float32)

    def __call__(self, x):
        return self.forward(x)

    def forward(self, x):
        T, B, L, D = x.shape
        N = T * B * L
        xf = x.reshape(N, D)
        itemsize = jnp.dtype(x.dtype).itemsize

        if self.training:
            if self.warm > 0:
                lamda = 1.0
            elif self.total_step == 0:
                lamda = 0.0
            else:
                lamda = self.r0 * float(self.iter) / float(self.total_step)
            lam_arr = jnp.full((1,), lamda, dtype=jnp.float32)
            n_arr = jnp.full((1,), float(N), dtype=jnp.float32)

            block_rows = _pick_block_rows(N, D * itemsize)
            y, bmean, bvar = _ptnorm_train_call(
                xf, self.ln_gamma, self.ln_beta,
                self.bn_gamma, self.bn_beta, lam_arr, n_arr,
                block_rows=block_rows)

            # BatchNorm2d running-stat update (unbiased var, momentum 0.1).
            unbiased = bvar * (float(N) / float(max(N - 1, 1)))
            m = self.momentum
            self.running_mean = (1.0 - m) * self.running_mean + m * bmean
            self.running_var = (1.0 - m) * self.running_var + m * unbiased

            # Buffer bookkeeping (host-side state, mirrors the PyTorch buffers).
            if self.warm > 0:
                self.warm -= 1
            if self.iter > 0:
                self.iter -= 1
            return y.reshape(T, B, L, D)
        else:
            # Lane-dense packing factor: D*pack == 128 when D divides 128.
            pack = (128 // D) if (D < 128 and 128 % D == 0) else 1
            rows = _cdiv(N, pack)
            block_rows = _pick_block_rows(rows, D * pack * itemsize)
            y = _ptnorm_eval_call(
                xf, self.bn_gamma, self.bn_beta,
                self.running_mean, self.running_var,
                block_rows=block_rows, pack=pack)
            return y.reshape(T, B, L, D)


if __name__ == "__main__":
    # Small shapes implied by the module: x is [T, B, L, D].
    T, B, L, D = 8, 2, 16, 32
    step = 10

    key = jax.random.PRNGKey(0)
    kx, k1, k2, k3, k4, k5, k6 = jax.random.split(key, 7)
    x = jax.random.normal(kx, (T, B, L, D), dtype=jnp.float32)

    model = PTNorm(dim=D, T=T, step=step, warm=0, r0=0.7)
    # Non-trivial affine params / running stats so both norms are exercised.
    model.ln_gamma = 1.0 + 0.1 * jax.random.normal(k1, (1, D), jnp.float32)
    model.ln_beta = 0.1 * jax.random.normal(k2, (1, D), jnp.float32)
    model.bn_gamma = 1.0 + 0.1 * jax.random.normal(k3, (1, D), jnp.float32)
    model.bn_beta = 0.1 * jax.random.normal(k4, (1, D), jnp.float32)
    model.running_mean = 0.1 * jax.random.normal(k5, (1, D), jnp.float32)
    model.running_var = jax.random.uniform(k6, (1, D), jnp.float32, 0.5, 1.5)

    # ------------------------- training path -------------------------
    lam = model.r0 * float(model.iter) / float(model.total_step)  # 0.7
    rm_before, rv_before = model.running_mean, model.running_var

    y_train = jax.block_until_ready(model(x))

    # Pure-JAX reference.
    eps = 1e-5
    mu_r = x.mean(-1, keepdims=True)
    var_r = ((x - mu_r) ** 2).mean(-1, keepdims=True)
    x1 = (x - mu_r) / jnp.sqrt(var_r + eps) * model.ln_gamma.reshape(D) \
         + model.ln_beta.reshape(D)
    mu_c = x.mean(axis=(0, 1, 2), keepdims=True)
    var_c = ((x - mu_c) ** 2).mean(axis=(0, 1, 2), keepdims=True)
    x2 = (x - mu_c) / jnp.sqrt(var_c + eps) * model.bn_gamma.reshape(D) \
         + model.bn_beta.reshape(D)
    y_ref = lam * x1 + (1.0 - lam) * x2

    assert y_train.shape == (T, B, L, D), y_train.shape
    assert y_train.dtype == x.dtype, y_train.dtype
    assert bool(jnp.allclose(y_train, y_ref, atol=1e-4, rtol=1e-4)), \
        "training-path mismatch"

    # Running-stat update reference (unbiased var, momentum 0.1).
    n = T * B * L
    rm_ref = 0.9 * rm_before + 0.1 * mu_c.reshape(1, D)
    rv_ref = 0.9 * rv_before + 0.1 * var_c.reshape(1, D) * (n / (n - 1))
    assert bool(jnp.allclose(model.running_mean, rm_ref, atol=1e-4, rtol=1e-4))
    assert bool(jnp.allclose(model.running_var, rv_ref, atol=1e-4, rtol=1e-4))
    assert model.iter == step - 1 and model.warm == 0

    # --------------------------- eval path ---------------------------
    model.training = False
    y_eval = jax.block_until_ready(model(x))
    inv = 1.0 / jnp.sqrt(model.running_var.reshape(D) + eps)
    y_eval_ref = (x - model.running_mean.reshape(D)) * inv \
                 * model.bn_gamma.reshape(D) + model.bn_beta.reshape(D)
    assert y_eval.shape == (T, B, L, D) and y_eval.dtype == x.dtype
    assert bool(jnp.allclose(y_eval, y_eval_ref, atol=1e-4, rtol=1e-4)), \
        "eval-path mismatch"

    print("KERNEL_OK")
</pallas_src>

<mosaic_0001>
module attributes {stable_mosaic.version = 11 : i64} {
  func.func @_ptnorm_stats_kernel(%arg0: i32, %arg1: memref<256x32xf32, #tpu.memory_space<vmem>>, %arg2: memref<1x32xf32, #tpu.memory_space<vmem>>, %arg3: memref<1x32xf32, #tpu.memory_space<vmem>>, %arg4: memref<1xf32, #tpu.memory_space<smem>>, %arg5: memref<1x32xf32, #tpu.memory_space<vmem>>, %arg6: memref<1x32xf32, #tpu.memory_space<vmem>>, %arg7: memref<1x32xf32, #tpu.memory_space<vmem>>, %arg8: memref<1x32xf32, #tpu.memory_space<vmem>>) attributes {dimension_semantics = [#tpu.dimension_semantics<arbitrary>], iteration_bounds = array<i64: 1>, scalar_prefetch = 0 : i64, scratch_operands = 0 : i64, tpu.core_type = #tpu.core_type<tc>, window_params = [{transform_indices = @transform_0, window_bounds = array<i64: 256, 32>}, {pipeline_mode = #tpu.pipeline_mode<synchronous>, transform_indices = @transform_1, window_bounds = array<i64: 1, 32>}, {pipeline_mode = #tpu.pipeline_mode<synchronous>, transform_indices = @transform_2, window_bounds = array<i64: 1, 32>}, {transform_indices = @transform_3, window_bounds = array<i64: 1>}, {pipeline_mode = #tpu.pipeline_mode<synchronous>, transform_indices = @transform_4, window_bounds = array<i64: 1, 32>}, {pipeline_mode = #tpu.pipeline_mode<synchronous>, transform_indices = @transform_5, window_bounds = array<i64: 1, 32>}, {pipeline_mode = #tpu.pipeline_mode<synchronous>, transform_indices = @transform_6, window_bounds = array<i64: 1, 32>}, {pipeline_mode = #tpu.pipeline_mode<synchronous>, transform_indices = @transform_7, window_bounds = array<i64: 1, 32>}]} {
    %c0_i32 = arith.constant 0 : i32
    %0 = arith.cmpi eq, %arg0, %c0_i32 : i32
    %1 = arith.extui %0 : i1 to i32
    %c0_i32_0 = arith.constant 0 : i32
    %2 = arith.cmpi ne, %1, %c0_i32_0 : i32
    scf.if %2 {
      %cst_13 = arith.constant 0.000000e+00 : f32
      %18 = vector.broadcast %cst_13 : f32 to vector<1x32xf32>
      %c0_14 = arith.constant 0 : index
      %c0_15 = arith.constant 0 : index
      %19 = vector.load %arg7[%c0_14, %c0_15] : memref<1x32xf32, #tpu.memory_space<vmem>>, vector<1x32xf32>
      tpu.vector_store %arg7[%c0_14, %c0_15], %18 {strides = array<i32>} : memref<1x32xf32, #tpu.memory_space<vmem>>, vector<1x32xf32>,
      %cst_16 = arith.constant 0.000000e+00 : f32
      %20 = vector.broadcast %cst_16 : f32 to vector<1x32xf32>
      %c0_17 = arith.constant 0 : index
      %c0_18 = arith.constant 0 : index
      %21 = vector.load %arg8[%c0_17, %c0_18] : memref<1x32xf32, #tpu.memory_space<vmem>>, vector<1x32xf32>
      tpu.vector_store %arg8[%c0_17, %c0_18], %20 {strides = array<i32>} : memref<1x32xf32, #tpu.memory_space<vmem>>, vector<1x32xf32>,
      %cst_19 = arith.constant 0.000000e+00 : f32
      %22 = vector.broadcast %cst_19 : f32 to vector<1x32xf32>
      %c0_20 = arith.constant 0 : index
      %c0_21 = arith.constant 0 : index
      %23 = vector.load %arg5[%c0_20, %c0_21] : memref<1x32xf32, #tpu.memory_space<vmem>>, vector<1x32xf32>
      tpu.vector_store %arg5[%c0_20, %c0_21], %22 {strides = array<i32>} : memref<1x32xf32, #tpu.memory_space<vmem>>, vector<1x32xf32>,
      %cst_22 = arith.constant 0.000000e+00 : f32
      %24 = vector.broadcast %cst_22 : f32 to vector<1x32xf32>
      %c0_23 = arith.constant 0 : index
      %c0_24 = arith.constant 0 : index
      %25 = vector.load %arg6[%c0_23, %c0_24] : memref<1x32xf32, #tpu.memory_space<vmem>>, vector<1x32xf32>
      tpu.vector_store %arg6[%c0_23, %c0_24], %24 {strides = array<i32>} : memref<1x32xf32, #tpu.memory_space<vmem>>, vector<1x32xf32>,
    } else {
    }
    %c0 = arith.constant 0 : index
    %c0_1 = arith.constant 0 : index
    %3 = vector.load %arg1[%c0, %c0_1] : memref<256x32xf32, #tpu.memory_space<vmem>>, vector<256x32xf32>
    %c0_2 = arith.constant 0 : index
    %c0_3 = arith.constant 0 : index
    %4 = vector.load %arg7[%c0_2, %c0_3] : memref<1x32xf32, #tpu.memory_space<vmem>>, vector<1x32xf32>
    %cst = arith.constant dense<0.000000e+00> : vector<32xf32>
    %5 = vector.multi_reduction <add>, %3, %cst [0] : vector<256x32xf32> to vector<32xf32>
    %6 = vector.shape_cast %5 : vector<32xf32> to vector<1x32xf32>
    %7 = arith.addf %4, %6 : vector<1x32xf32>
    %c0_4 = arith.constant 0 : index
    %c0_5 = arith.constant 0 : index
    %8 = vector.load %arg7[%c0_4, %c0_5] : memref<1x32xf32, #tpu.memory_space<vmem>>, vector<1x32xf32>
    tpu.vector_store %arg7[%c0_4, %c0_5], %7 {strides = array<i32>} : memref<1x32xf32, #tpu.memory_space<vmem>>, vector<1x32xf32>,
    %c0_6 = arith.constant 0 : index
    %c0_7 = arith.constant 0 : index
    %9 = vector.load %arg8[%c0_6, %c0_7] : memref<1x32xf32, #tpu.memory_space<vmem>>, vector<1x32xf32>
    %10 = arith.mulf %3, %3 : vector<256x32xf32>
    %cst_8 = arith.constant dense<0.000000e+00> : vector<32xf32>
    %11 = vector.multi_reduction <add>, %10, %cst_8 [0] : vector<256x32xf32> to vector<32xf32>
    %12 = vector.shape_cast %11 : vector<32xf32> to vector<1x32xf32>
    %13 = arith.addf %9, %12 : vector<1x32xf32>
    %c0_9 = arith.constant 0 : index
    %c0_10 = arith.constant 0 : index
    %14 = vector.load %arg8[%c0_9, %c0_10] : memref<1x32xf32, #tpu.memory_space<vmem>>, vector<1x32xf32>
    tpu.vector_store %arg8[%c0_9, %c0_10], %13 {strides = array<i32>} : memref<1x32xf32, #tpu.memory_space<vmem>>, vector<1x32xf32>,
    %c0_i32_11 = arith.constant 0 : i32
    %15 = arith.cmpi eq, %arg0, %c0_i32_11 : i32
    %16 = arith.extui %15 : i1 to i32
    %c0_i32_12 = arith.constant 0 : i32
    %17 = arith.cmpi ne, %16, %c0_i32_12 : i32
    scf.if %17 {
      %c0_13 = arith.constant 0 : index
      %18 = memref.load %arg4[%c0_13] : memref<1xf32, #tpu.memory_space<smem>>
      %cst_14 = arith.constant 1.000000e+00 : f32
      %19 = arith.divf %cst_14, %18 : f32
      %c0_15 = arith.constant 0 : index
      %c0_16 = arith.constant 0 : index
      %20 = vector.load %arg7[%c0_15, %c0_16] : memref<1x32xf32, #tpu.memory_space<vmem>>, vector<1x32xf32>
      %21 = vector.broadcast %19 : f32 to vector<1x32xf32>
      %22 = arith.mulf %20, %21 : vector<1x32xf32>
      %c0_17 = arith.constant 0 : index
      %c0_18 = arith.constant 0 : index
      %23 = vector.load %arg8[%c0_17, %c0_18] : memref<1x32xf32, #tpu.memory_space<vmem>>, vector<1x32xf32>
      %24 = vector.broadcast %19 : f32 to vector<1x32xf32>
      %25 = arith.mulf %23, %24 : vector<1x32xf32>
      %26 = arith.mulf %22, %22 : vector<1x32xf32>
      %27 = arith.subf %25, %26 : vector<1x32xf32>
      %cst_19 = arith.constant 0.000000e+00 : f32
      %28 = vector.broadcast %cst_19 : f32 to vector<1x32xf32>
      %29 = arith.maximumf %27, %28 : vector<1x32xf32>
      %c0_20 = arith.constant 0 : index
      %c0_21 = arith.constant 0 : index
      %30 = vector.load %arg7[%c0_20, %c0_21] : memref<1x32xf32, #tpu.memory_space<vmem>>, vector<1x32xf32>
      tpu.vector_store %arg7[%c0_20, %c0_21], %22 {strides = array<i32>} : memref<1x32xf32, #tpu.memory_space<vmem>>, vector<1x32xf32>,
      %c0_22 = arith.constant 0 : index
      %c0_23 = arith.constant 0 : index
      %31 = vector.load %arg8[%c0_22, %c0_23] : memref<1x32xf32, #tpu.memory_space<vmem>>, vector<1x32xf32>
      tpu.vector_store %arg8[%c0_22, %c0_23], %29 {strides = array<i32>} : memref<1x32xf32, #tpu.memory_space<vmem>>, vector<1x32xf32>,
      %c0_24 = arith.constant 0 : index
      %c0_25 = arith.constant 0 : index
      %32 = vector.load %arg2[%c0_24, %c0_25] : memref<1x32xf32, #tpu.memory_space<vmem>>, vector<1x32xf32>
      %cst_26 = arith.constant 9.99999974E-6 : f32
      %33 = vector.broadcast %cst_26 : f32 to vector<1x32xf32>
      %34 = arith.addf %29, %33 : vector<1x32xf32>
      %35 = math.rsqrt %34 : vector<1x32xf32>
      %36 = arith.mulf %32, %35 : vector<1x32xf32>
      %c0_27 = arith.constant 0 : index
      %c0_28 = arith.constant 0 : index
      %37 = vector.load %arg5[%c0_27, %c0_28] : memref<1x32xf32, #tpu.memory_space<vmem>>, vector<1x32xf32>
      tpu.vector_store %arg5[%c0_27, %c0_28], %36 {strides = array<i32>} : memref<1x32xf32, #tpu.memory_space<vmem>>, vector<1x32xf32>,
      %c0_29 = arith.constant 0 : index
      %c0_30 = arith.constant 0 : index
      %38 = vector.load %arg3[%c0_29, %c0_30] : memref<1x32xf32, #tpu.memory_space<vmem>>, vector<1x32xf32>
      %39 = arith.mulf %22, %36 : vector<1x32xf32>
      %40 = arith.subf %38, %39 : vector<1x32xf32>
      %c0_31 = arith.constant 0 : index
      %c0_32 = arith.constant 0 : index
      %41 = vector.load %arg6[%c0_31, %c0_32] : memref<1x32xf32, #tpu.memory_space<vmem>>, vector<1x32xf32>
      tpu.vector_store %arg6[%c0_31, %c0_32], %40 {strides = array<i32>} : memref<1x32xf32, #tpu.memory_space<vmem>>, vector<1x32xf32>,
    } else {
    }
    return
  }
  func.func @transform_0(%arg0: i32) -> (i32, i32) {
    %c0_i32 = arith.constant 0 : i32
    %c0_i32_0 = arith.constant 0 : i32
    return %arg0, %c0_i32 : i32, i32
  }
  func.func @transform_1(%arg0: i32) -> (i32, i32) {
    %c0_i32 = arith.constant 0 : i32
    %c0_i32_0 = arith.constant 0 : i32
    %c0_i32_1 = arith.constant 0 : i32
    return %c0_i32, %c0_i32_0 : i32, i32
  }
  func.func @transform_2(%arg0: i32) -> (i32, i32) {
    %c0_i32 = arith.constant 0 : i32
    %c0_i32_0 = arith.constant 0 : i32
    %c0_i32_1 = arith.constant 0 : i32
    return %c0_i32, %c0_i32_0 : i32, i32
  }
  func.func @transform_3(%arg0: i32) -> i32 {
    %c0_i32 = arith.constant 0 : i32
    %c0_i32_0 = arith.constant 0 : i32
    return %c0_i32 : i32
  }
  func.func @transform_4(%arg0: i32) -> (i32, i32) {
    %c0_i32 = arith.constant 0 : i32
    %c0_i32_0 = arith.constant 0 : i32
    %c0_i32_1 = arith.constant 0 : i32
    return %c0_i32, %c0_i32_0 : i32, i32
  }
  func.func @transform_5(%arg0: i32) -> (i32, i32) {
    %c0_i32 = arith.constant 0 : i32
    %c0_i32_0 = arith.constant 0 : i32
    %c0_i32_1 = arith.constant 0 : i32
    return %c0_i32, %c0_i32_0 : i32, i32
  }
  func.func @transform_6(%arg0: i32) -> (i32, i32) {
    %c0_i32 = arith.constant 0 : i32
    %c0_i32_0 = arith.constant 0 : i32
    %c0_i32_1 = arith.constant 0 : i32
    return %c0_i32, %c0_i32_0 : i32, i32
  }
  func.func @transform_7(%arg0: i32) -> (i32, i32) {
    %c0_i32 = arith.constant 0 : i32
    %c0_i32_0 = arith.constant 0 : i32
    %c0_i32_1 = arith.constant 0 : i32
    return %c0_i32, %c0_i32_0 : i32, i32
  }
}

module attributes {stable_mosaic.version = 11 : i64} {
  func.func @_ptnorm_apply_kernel(%arg0: i32, %arg1: memref<256x32xf32, #tpu.memory_space<vmem>>, %arg2: memref<1x32xf32, #tpu.memory_space<vmem>>, %arg3: memref<1x32xf32, #tpu.memory_space<vmem>>, %arg4: memref<1x32xf32, #tpu.memory_space<vmem>>, %arg5: memref<1x32xf32, #tpu.memory_space<vmem>>, %arg6: memref<1xf32, #tpu.memory_space<smem>>, %arg7: memref<256x32xf32, #tpu.memory_space<vmem>>) attributes {dimension_semantics = [#tpu.dimension_semantics<parallel>], iteration_bounds = array<i64: 1>, scalar_prefetch = 0 : i64, scratch_operands = 0 : i64, tpu.core_type = #tpu.core_type<tc>, window_params = [{transform_indices = @transform_0, window_bounds = array<i64: 256, 32>}, {pipeline_mode = #tpu.pipeline_mode<synchronous>, transform_indices = @transform_1, window_bounds = array<i64: 1, 32>}, {pipeline_mode = #tpu.pipeline_mode<synchronous>, transform_indices = @transform_2, window_bounds = array<i64: 1, 32>}, {pipeline_mode = #tpu.pipeline_mode<synchronous>, transform_indices = @transform_3, window_bounds = array<i64: 1, 32>}, {pipeline_mode = #tpu.pipeline_mode<synchronous>, transform_indices = @transform_4, window_bounds = array<i64: 1, 32>}, {transform_indices = @transform_5, window_bounds = array<i64: 1>}, {transform_indices = @transform_6, window_bounds = array<i64: 256, 32>}]} {
    %c0 = arith.constant 0 : index
    %c0_0 = arith.constant 0 : index
    %0 = vector.load %arg1[%c0, %c0_0] : memref<256x32xf32, #tpu.memory_space<vmem>>, vector<256x32xf32>
    %cst = arith.constant dense<0.000000e+00> : vector<256xf32>
    %1 = vector.multi_reduction <add>, %0, %cst [1] : vector<256x32xf32> to vector<256xf32>
    %2 = vector.shape_cast %1 : vector<256xf32> to vector<256x1xf32>
    %cst_1 = arith.constant 3.200000e+01 : f32
    %3 = vector.broadcast %cst_1 : f32 to vector<256x1xf32>
    %4 = arith.divf %2, %3 : vector<256x1xf32>
    %5 = vector.broadcast %4 : vector<256x1xf32> to vector<256x32xf32>
    %6 = arith.subf %0, %5 : vector<256x32xf32>
    %7 = arith.mulf %6, %6 : vector<256x32xf32>
    %cst_2 = arith.constant dense<0.000000e+00> : vector<256xf32>
    %8 = vector.multi_reduction <add>, %7, %cst_2 [1] : vector<256x32xf32> to vector<256xf32>
    %9 = vector.shape_cast %8 : vector<256xf32> to vector<256x1xf32>
    %cst_3 = arith.constant 3.200000e+01 : f32
    %10 = vector.broadcast %cst_3 : f32 to vector<256x1xf32>
    %11 = arith.divf %9, %10 : vector<256x1xf32>
    %cst_4 = arith.constant 9.99999974E-6 : f32
    %12 = vector.broadcast %cst_4 : f32 to vector<256x1xf32>
    %13 = arith.addf %11, %12 : vector<256x1xf32>
    %14 = math.rsqrt %13 : vector<256x1xf32>
    %15 = vector.broadcast %14 : vector<256x1xf32> to vector<256x32xf32>
    %16 = arith.mulf %6, %15 : vector<256x32xf32>
    %c0_5 = arith.constant 0 : index
    %c0_6 = arith.constant 0 : index
    %17 = vector.load %arg2[%c0_5, %c0_6] : memref<1x32xf32, #tpu.memory_space<vmem>>, vector<1x32xf32>
    %18 = vector.broadcast %17 : vector<1x32xf32> to vector<256x32xf32>
    %19 = arith.mulf %16, %18 : vector<256x32xf32>
    %c0_7 = arith.constant 0 : index
    %c0_8 = arith.constant 0 : index
    %20 = vector.load %arg3[%c0_7, %c0_8] : memref<1x32xf32, #tpu.memory_space<vmem>>, vector<1x32xf32>
    %21 = vector.broadcast %20 : vector<1x32xf32> to vector<256x32xf32>
    %22 = arith.addf %19, %21 : vector<256x32xf32>
    %c0_9 = arith.constant 0 : index
    %c0_10 = arith.constant 0 : index
    %23 = vector.load %arg4[%c0_9, %c0_10] : memref<1x32xf32, #tpu.memory_space<vmem>>, vector<1x32xf32>
    %24 = vector.broadcast %23 : vector<1x32xf32> to vector<256x32xf32>
    %25 = arith.mulf %0, %24 : vector<256x32xf32>
    %c0_11 = arith.constant 0 : index
    %c0_12 = arith.constant 0 : index
    %26 = vector.load %arg5[%c0_11, %c0_12] : memref<1x32xf32, #tpu.memory_space<vmem>>, vector<1x32xf32>
    %27 = vector.broadcast %26 : vector<1x32xf32> to vector<256x32xf32>
    %28 = arith.addf %25, %27 : vector<256x32xf32>
    %c0_13 = arith.constant 0 : index
    %29 = memref.load %arg6[%c0_13] : memref<1xf32, #tpu.memory_space<smem>>
    %30 = arith.subf %22, %28 : vector<256x32xf32>
    %31 = vector.broadcast %29 : f32 to vector<256x32xf32>
    %32 = arith.mulf %31, %30 : vector<256x32xf32>
    %33 = arith.addf %28, %32 : vector<256x32xf32>
    %c0_14 = arith.constant 0 : index
    %c0_15 = arith.constant 0 : index
    %34 = vector.load %arg7[%c0_14, %c0_15] : memref<256x32xf32, #tpu.memory_space<vmem>>, vector<256x32xf32>
    tpu.vector_store %arg7[%c0_14, %c0_15], %33 {strides = array<i32>} : memref<256x32xf32, #tpu.memory_space<vmem>>, vector<256x32xf32>,
    return
  }
  func.func @transform_0(%arg0: i32) -> (i32, i32) {
    %c0_i32 = arith.constant 0 : i32
    %c0_i32_0 = arith.constant 0 : i32
    return %arg0, %c0_i32 : i32, i32
  }
  func.func @transform_1(%arg0: i32) -> (i32, i32) {
    %c0_i32 = arith.constant 0 : i32
    %c0_i32_0 = arith.constant 0 : i32
    %c0_i32_1 = arith.constant 0 : i32
    return %c0_i32, %c0_i32_0 : i32, i32
  }
  func.func @transform_2(%arg0: i32) -> (i32, i32) {
    %c0_i32 = arith.constant 0 : i32
    %c0_i32_0 = arith.constant 0 : i32
    %c0_i32_1 = arith.constant 0 : i32
    return %c0_i32, %c0_i32_0 : i32, i32
  }
  func.func @transform_3(%arg0: i32) -> (i32, i32) {
    %c0_i32 = arith.constant 0 : i32
    %c0_i32_0 = arith.constant 0 : i32
    %c0_i32_1 = arith.constant 0 : i32
    return %c0_i32, %c0_i32_0 : i32, i32
  }
  func.func @transform_4(%arg0: i32) -> (i32, i32) {
    %c0_i32 = arith.constant 0 : i32
    %c0_i32_0 = arith.constant 0 : i32
    %c0_i32_1 = arith.constant 0 : i32
    return %c0_i32, %c0_i32_0 : i32, i32
  }
  func.func @transform_5(%arg0: i32) -> i32 {
    %c0_i32 = arith.constant 0 : i32
    %c0_i32_0 = arith.constant 0 : i32
    return %c0_i32 : i32
  }
  func.func @transform_6(%arg0: i32) -> (i32, i32) {
    %c0_i32 = arith.constant 0 : i32
    %c0_i32_0 = arith.constant 0 : i32
    return %arg0, %c0_i32 : i32, i32
  }
}

</mosaic_0001>

<llo_original>
// kernel: _ptnorm_train_call.2
$region0: #{_ptnorm_train_call.2}
  #allocation0 [shape = 'u32[]', space=smem, size = 0x4, offset = 0x4, fixed_abs, tag = 'smem constant byte address 0x4 - core index']
  #allocation1 [shape = 'u32[144,128]{1,0:T(1,128)}', space=vmem, size = 0x12000, scoped, tag = 'internal scratch']
  #allocation2 [shape = 'f32[1]{0:T(128)S(6)}', space=smem, size = 0x200, scoped, tag = 'scoped memory for _ptnorm_train_call.2']
  %s0 = inlined_call_operand.vmem [shape: f32[256,32], index: 0, kind: input, shape index: {}]
  %s1 = inlined_call_operand.vmem [shape: f32[1,32], index: 1, kind: input, shape index: {}]
  %s2 = inlined_call_operand.vmem [shape: f32[1,32], index: 2, kind: input, shape index: {}]
  %s3 = inlined_call_operand.<no memory space> [shape: f32[1], index: 3, kind: input, shape index: {}]
  %s4 = inlined_call_operand.vmem [shape: f32[1,32], index: 4, kind: output, shape index: {0}]
  %s5 = inlined_call_operand.vmem [shape: f32[1,32], index: 5, kind: output, shape index: {1}]
  %s6 = inlined_call_operand.hbm [shape: f32[1,32], index: 6, kind: output, shape index: {2}]
  %s7 = inlined_call_operand.hbm [shape: f32[1,32], index: 7, kind: output, shape index: {3}]
  %8 = xla_tuple %s4, %s5, %s6, %s7
  %s9 = sld [smem:[#allocation0]]
  $region58: #{_ptnorm_train_call.2} parent=0
    _
  %s11 = ssub.s32 1, %s9
  %s12 = scalar_select 0, %s11, %s9
  %13 = sst [smem:[#allocation2]] %s3
  $region1: #{_ptnorm_train_call.2} parent=0
    #allocation3 [shape = 'u8[512]{0}', space=vmem, size = 0x400, scoped, tag = 'output window, operand 2, single buffered']
    #allocation4 [shape = 's32[1]{0}', space=sflag, size = 0x4, scoped, tag = 'scoped memory for _ptnorm_train_call.2']
    #allocation5 [shape = 'u8[512]{0}', space=vmem, size = 0x400, scoped, tag = 'output window, operand 3, single buffered']
    #allocation6 [shape = 's32[1]{0}', space=sflag, size = 0x4, scoped, tag = 'scoped memory for _ptnorm_train_call.2']
    %14 = vsyncpa [#allocation4], 0
    %15 = vsyncpa [#allocation6], 0
    // Predicated region
    $region2: #{_ptnorm_train_call.2} parent=1 // pred_check
      _
    $region3: #{_ptnorm_train_call.2} parent=1 // pred_check_branch
      %17 = sbr.rel (0) target = $region5
    $region4: #{_ptnorm_train_call.2} parent=1 // pred_region
      _
    $region5: #{_ptnorm_train_call.2} parent=1 // pred_fallthru
      _
    // Predicated region
    $region6: #{_ptnorm_train_call.2} parent=1 // pred_check
      _
    $region7: #{_ptnorm_train_call.2} parent=1 // pred_check_branch
      %19 = sbr.rel (0) target = $region9
    $region8: #{_ptnorm_train_call.2} parent=1 // pred_region
      _
    $region9: #{_ptnorm_train_call.2} parent=1 // pred_fallthru
      _
    // Predicated region
    $region10: #{_ptnorm_train_call.2} parent=1 // pred_check
      _
    $region11: #{_ptnorm_train_call.2} parent=1 // pred_check_branch
      %21 = sbr.rel (0) target = $region13
    $region12: #{_ptnorm_train_call.2} parent=1 // pred_region
      _
    $region13: #{_ptnorm_train_call.2} parent=1 // pred_fallthru
      _
    // Predicated region
    $region14: #{_ptnorm_train_call.2} parent=1 // pred_check
      _
    $region15: #{_ptnorm_train_call.2} parent=1 // pred_check_branch
      %23 = sbr.rel (0) target = $region17
    $region16: #{_ptnorm_train_call.2} parent=1 // pred_region
      _
    $region17: #{_ptnorm_train_call.2} parent=1 // pred_fallthru
      _
    %p24 = scmp.eq.s32.totalorder 0, 0
    // Predicated region
    $region18: #{_ptnorm_train_call.2} parent=1 // pred_check
      %p25 = pneg %p24
    $region19: #{_ptnorm_train_call.2} parent=1 // pred_check_branch
      %27 = sbr.rel (%p25) target = $region21
    $region20: #{_ptnorm_train_call.2} parent=1 // pred_region
      %vm28 = vcmask 253952
      %29 = vst.msk [vmem:[#allocation3] sm:$0x1] %vm28, 0.0
      %30 = vst.msk [vmem:[#allocation5] sm:$0x1] %vm28, 0.0
      %31 = vst.msk [vmem:[%s4] sm:$0x1] %vm28, 0.0
      %32 = vst.msk [vmem:[%s5] sm:$0x1] %vm28, 0.0
    $region21: #{_ptnorm_train_call.2} parent=1 // pred_fallthru
      _
    %v33 = vld [vmem:[%s0] sm:$0xff]
    %v34 = vld [vmem:[%s0 + $0x8] sm:$0xff]
    %v35 = vld [vmem:[%s0 + $0x10] sm:$0xff]
    %v36 = vld [vmem:[%s0 + $0x18] sm:$0xff]
    %v37 = vld [vmem:[%s0 + $0x20] sm:$0xff]
    %v38 = vld [vmem:[%s0 + $0x28] sm:$0xff]
    %v39 = vld [vmem:[%s0 + $0x30] sm:$0xff]
    %v40 = vld [vmem:[%s0 + $0x38] sm:$0xff]
    %v41 = vld [vmem:[%s0 + $0x40] sm:$0xff]
    %v42 = vld [vmem:[%s0 + $0x48] sm:$0xff]
    %v43 = vld [vmem:[%s0 + $0x50] sm:$0xff]
    %v44 = vld [vmem:[%s0 + $0x58] sm:$0xff]
    %v45 = vld [vmem:[%s0 + $0x60] sm:$0xff]
    %v46 = vld [vmem:[%s0 + $0x68] sm:$0xff]
    %v47 = vld [vmem:[%s0 + $0x70] sm:$0xff]
    %v48 = vld [vmem:[%s0 + $0x78] sm:$0xff]
    %v49 = vld [vmem:[%s0 + $0x80] sm:$0xff]
    %v50 = vld [vmem:[%s0 + $0x88] sm:$0xff]
    %v51 = vld [vmem:[%s0 + $0x90] sm:$0xff]
    %v52 = vld [vmem:[%s0 + $0x98] sm:$0xff]
    %v53 = vld [vmem:[%s0 + $0xa0] sm:$0xff]
    %v54 = vld [vmem:[%s0 + $0xa8] sm:$0xff]
    %v55 = vld [vmem:[%s0 + $0xb0] sm:$0xff]
    %v56 = vld [vmem:[%s0 + $0xb8] sm:$0xff]
    %v57 = vld [vmem:[%s0 + $0xc0] sm:$0xff]
    %v58 = vld [vmem:[%s0 + $0xc8] sm:$0xff]
    %v59 = vld [vmem:[%s0 + $0xd0] sm:$0xff]
    %v60 = vld [vmem:[%s0 + $0xd8] sm:$0xff]
    %v61 = vld [vmem:[%s0 + $0xe0] sm:$0xff]
    %v62 = vld [vmem:[%s0 + $0xe8] sm:$0xff]
    %v63 = vld [vmem:[%s0 + $0xf0] sm:$0xff]
    %v64 = vld [vmem:[%s0 + $0xf8] sm:$0xff]
    %v65 = vld [vmem:[#allocation3] sm:$0x1]
    %vm66 = vcmask 261120
    %v67 = vsel %vm66, %v33, 0.0
    %v68 = vsel %vm66, %v34, 0.0
    %v69 = vadd.f32 %v67, %v68
    %v70 = vsel %vm66, %v35, 0.0
    %v71 = vadd.f32 %v69, %v70
    %v72 = vsel %vm66, %v36, 0.0
    %v73 = vadd.f32 %v71, %v72
    %v74 = vsel %vm66, %v37, 0.0
    %v75 = vadd.f32 %v73, %v74
    %v76 = vsel %vm66, %v38, 0.0
    %v77 = vadd.f32 %v75, %v76
    %v78 = vsel %vm66, %v39, 0.0
    %v79 = vadd.f32 %v77, %v78
    %v80 = vsel %vm66, %v40, 0.0
    %v81 = vadd.f32 %v79, %v80
    %v82 = vsel %vm66, %v41, 0.0
    %v83 = vadd.f32 %v81, %v82
    %v84 = vsel %vm66, %v42, 0.0
    %v85 = vadd.f32 %v83, %v84
    %v86 = vsel %vm66, %v43, 0.0
    %v87 = vadd.f32 %v85, %v86
    %v88 = vsel %vm66, %v44, 0.0
    %v89 = vadd.f32 %v87, %v88
    %v90 = vsel %vm66, %v45, 0.0
    %v91 = vadd.f32 %v89, %v90
    %v92 = vsel %vm66, %v46, 0.0
    %v93 = vadd.f32 %v91, %v92
    %v94 = vsel %vm66, %v47, 0.0
    %v95 = vadd.f32 %v93, %v94
    %v96 = vsel %vm66, %v48, 0.0
    %v97 = vadd.f32 %v95, %v96
    %v98 = vsel %vm66, %v49, 0.0
    %v99 = vadd.f32 %v97, %v98
    %v100 = vsel %vm66, %v50, 0.0
    %v101 = vadd.f32 %v99, %v100
    %v102 = vsel %vm66, %v51, 0.0
    %v103 = vadd.f32 %v101, %v102
    %v104 = vsel %vm66, %v52, 0.0
    %v105 = vadd.f32 %v103, %v104
    %v106 = vsel %vm66, %v53, 0.0
    %v107 = vadd.f32 %v105, %v106
    %v108 = vsel %vm66, %v54, 0.0
    %v109 = vadd.f32 %v107, %v108
    %v110 = vsel %vm66, %v55, 0.0
    %v111 = vadd.f32 %v109, %v110
    %v112 = vsel %vm66, %v56, 0.0
    %v113 = vadd.f32 %v111, %v112
    %v114 = vsel %vm66, %v57, 0.0
    %v115 = vadd.f32 %v113, %v114
    %v116 = vsel %vm66, %v58, 0.0
    %v117 = vadd.f32 %v115, %v116
    %v118 = vsel %vm66, %v59, 0.0
    %v119 = vadd.f32 %v117, %v118
    %v120 = vsel %vm66, %v60, 0.0
    %v121 = vadd.f32 %v119, %v120
    %v122 = vsel %vm66, %v61, 0.0
    %v123 = vadd.f32 %v121, %v122
    %v124 = vsel %vm66, %v62, 0.0
    %v125 = vadd.f32 %v123, %v124
    %v126 = vsel %vm66, %v63, 0.0
    %v127 = vadd.f32 %v125, %v126
    %v128 = vsel %vm66, %v64, 0.0
    %v129 = vadd.f32 %v127, %v128
    %v130 = vrot.slane %v129, 4
    %v131 = vadd.f32 %v129, %v130
    %v132 = vrot.slane %v131, 2
    %v133 = vadd.f32 %v131, %v132
    %v134 = vrot.slane %v133, 1
    %v135 = vadd.f32 %v133, %v134
    %v136 = vadd.f32 %v65, %v135
    %vm137 = vcmask 253952
    %138 = vst.msk [vmem:[#allocation3] sm:$0x1] %vm137, %v136
    %v139 = vld [vmem:[#allocation5] sm:$0x1]
    %v140 = vmul.f32 %v33, %v33
    %v141 = vmul.f32 %v34, %v34
    %v142 = vmul.f32 %v35, %v35
    %v143 = vmul.f32 %v36, %v36
    %v144 = vmul.f32 %v37, %v37
    %v145 = vmul.f32 %v38, %v38
    %v146 = vmul.f32 %v39, %v39
    %v147 = vmul.f32 %v40, %v40
    %v148 = vmul.f32 %v41, %v41
    %v149 = vmul.f32 %v42, %v42
    %v150 = vmul.f32 %v43, %v43
    %v151 = vmul.f32 %v44, %v44
    %v152 = vmul.f32 %v45, %v45
    %v153 = vmul.f32 %v46, %v46
    %v154 = vmul.f32 %v47, %v47
    %v155 = vmul.f32 %v48, %v48
    %v156 = vmul.f32 %v49, %v49
    %v157 = vmul.f32 %v50, %v50
    %v158 = vmul.f32 %v51, %v51
    %v159 = vmul.f32 %v52, %v52
    %v160 = vmul.f32 %v53, %v53
    %v161 = vmul.f32 %v54, %v54
    %v162 = vmul.f32 %v55, %v55
    %v163 = vmul.f32 %v56, %v56
    %v164 = vmul.f32 %v57, %v57
    %v165 = vmul.f32 %v58, %v58
    %v166 = vmul.f32 %v59, %v59
    %v167 = vmul.f32 %v60, %v60
    %v168 = vmul.f32 %v61, %v61
    %v169 = vmul.f32 %v62, %v62
    %v170 = vmul.f32 %v63, %v63
    %v171 = vmul.f32 %v64, %v64
    %v172 = vsel %vm66, %v140, 0.0
    %v173 = vsel %vm66, %v141, 0.0
    %v174 = vadd.f32 %v172, %v173
    %v175 = vsel %vm66, %v142, 0.0
    %v176 = vadd.f32 %v174, %v175
    %v177 = vsel %vm66, %v143, 0.0
    %v178 = vadd.f32 %v176, %v177
    %v179 = vsel %vm66, %v144, 0.0
    %v180 = vadd.f32 %v178, %v179
    %v181 = vsel %vm66, %v145, 0.0
    %v182 = vadd.f32 %v180, %v181
    %v183 = vsel %vm66, %v146, 0.0
    %v184 = vadd.f32 %v182, %v183
    %v185 = vsel %vm66, %v147, 0.0
    %v186 = vadd.f32 %v184, %v185
    %v187 = vsel %vm66, %v148, 0.0
    %v188 = vadd.f32 %v186, %v187
    %v189 = vsel %vm66, %v149, 0.0
    %v190 = vadd.f32 %v188, %v189
    %v191 = vsel %vm66, %v150, 0.0
    %v192 = vadd.f32 %v190, %v191
    %v193 = vsel %vm66, %v151, 0.0
    %v194 = vadd.f32 %v192, %v193
    %v195 = vsel %vm66, %v152, 0.0
    %v196 = vadd.f32 %v194, %v195
    %v197 = vsel %vm66, %v153, 0.0
    %v198 = vadd.f32 %v196, %v197
    %v199 = vsel %vm66, %v154, 0.0
    %v200 = vadd.f32 %v198, %v199
    %v201 = vsel %vm66, %v155, 0.0
    %v202 = vadd.f32 %v200, %v201
    %v203 = vsel %vm66, %v156, 0.0
    %v204 = vadd.f32 %v202, %v203
    %v205 = vsel %vm66, %v157, 0.0
    %v206 = vadd.f32 %v204, %v205
    %v207 = vsel %vm66, %v158, 0.0
    %v208 = vadd.f32 %v206, %v207
    %v209 = vsel %vm66, %v159, 0.0
    %v210 = vadd.f32 %v208, %v209
    %v211 = vsel %vm66, %v160, 0.0
    %v212 = vadd.f32 %v210, %v211
    %v213 = vsel %vm66, %v161, 0.0
    %v214 = vadd.f32 %v212, %v213
    %v215 = vsel %vm66, %v162, 0.0
    %v216 = vadd.f32 %v214, %v215
    %v217 = vsel %vm66, %v163, 0.0
    %v218 = vadd.f32 %v216, %v217
    %v219 = vsel %vm66, %v164, 0.0
    %v220 = vadd.f32 %v218, %v219
    %v221 = vsel %vm66, %v165, 0.0
    %v222 = vadd.f32 %v220, %v221
    %v223 = vsel %vm66, %v166, 0.0
    %v224 = vadd.f32 %v222, %v223
    %v225 = vsel %vm66, %v167, 0.0
    %v226 = vadd.f32 %v224, %v225
    %v227 = vsel %vm66, %v168, 0.0
    %v228 = vadd.f32 %v226, %v227
    %v229 = vsel %vm66, %v169, 0.0
    %v230 = vadd.f32 %v228, %v229
    %v231 = vsel %vm66, %v170, 0.0
    %v232 = vadd.f32 %v230, %v231
    %v233 = vsel %vm66, %v171, 0.0
    %v234 = vadd.f32 %v232, %v233
    %v235 = vrot.slane %v234, 4
    %v236 = vadd.f32 %v234, %v235
    %v237 = vrot.slane %v236, 2
    %v238 = vadd.f32 %v236, %v237
    %v239 = vrot.slane %v238, 1
    %v240 = vadd.f32 %v238, %v239
    %v241 = vadd.f32 %v139, %v240
    %242 = vst.msk [vmem:[#allocation5] sm:$0x1] %vm137, %v241
    // Predicated region
    $region22: #{_ptnorm_train_call.2} parent=1 // pred_check
      %p243 = pneg %p24
    $region23: #{_ptnorm_train_call.2} parent=1 // pred_check_branch
      %245 = sbr.rel (%p243) target = $region25
    $region24: #{_ptnorm_train_call.2} parent=1 // pred_region
      %s246 = sld [smem:[#allocation2]]
      %v247 = vstv %s246
      %v248 = vrcp.pop %v247
      %s249 = vtos %v248
      %v250 = vld [vmem:[#allocation3] sm:$0x1]
      %v251 = vstv %s249
      %v252 = vmul.f32 %v250, %v251
      %v253 = vld [vmem:[#allocation5] sm:$0x1]
      %v254 = vmul.f32 %v253, %v251
      %v255 = vmul.f32 %v252, %v252
      %v256 = vsub.f32 %v254, %v255
      %v257 = vmax.f32 %v256, 0.0
      %258 = vst.msk [vmem:[#allocation3] sm:$0x1] %vm137, %v252
      %259 = vst.msk [vmem:[#allocation5] sm:$0x1] %vm137, %v257
      %v260 = vld [vmem:[%s1] sm:$0x1]
      %v261 = vadd.f32 %v257, 1e-05
      %v262 = vrsqrt.pop %v261
      %v263 = vmul.f32 %v260, %v262
      %264 = vst.msk [vmem:[%s4] sm:$0x1] %vm137, %v263
      %v265 = vld [vmem:[%s2] sm:$0x1]
      %v266 = vmul.f32 %v252, %v263
      %v267 = vsub.f32 %v265, %v266
      %268 = vst.msk [vmem:[%s5] sm:$0x1] %vm137, %v267
    $region25: #{_ptnorm_train_call.2} parent=1 // pred_fallthru
      _
    // Predicated region
    $region26: #{_ptnorm_train_call.2} parent=1 // pred_check
      _
    $region27: #{_ptnorm_train_call.2} parent=1 // pred_check_branch
      %270 = sbr.rel (0) target = $region29
    $region28: #{_ptnorm_train_call.2} parent=1 // pred_region
      _
    $region29: #{_ptnorm_train_call.2} parent=1 // pred_fallthru
      _
    // Predicated region
    $region30: #{_ptnorm_train_call.2} parent=1 // pred_check
      _
    $region31: #{_ptnorm_train_call.2} parent=1 // pred_check_branch
      %272 = sbr.rel (0) target = $region33
    $region32: #{_ptnorm_train_call.2} parent=1 // pred_region
      _
    $region33: #{_ptnorm_train_call.2} parent=1 // pred_fallthru
      _
    // Predicated region
    $region34: #{_ptnorm_train_call.2} parent=1 // pred_check
      _
    $region35: #{_ptnorm_train_call.2} parent=1 // pred_check_branch
      %274 = sbr.rel (0) target = $region37
    $region36: #{_ptnorm_train_call.2} parent=1 // pred_region
      %s276 = ssub.s32 16, 16
      %277 = vsyncadd [#allocation4], %s276
      %s279 = sshll.u32 [#allocation3], 4
      %s280 = int_to_ptr.vmem [resolvable:$true] %s279
      %282 = dma.vmem_to_hbm [thread:$0]  %s280, 16, %s6, [#allocation4]
    $region37: #{_ptnorm_train_call.2} parent=1 // pred_fallthru
      _
    // Predicated region
    $region38: #{_ptnorm_train_call.2} parent=1 // pred_check
      _
    $region39: #{_ptnorm_train_call.2} parent=1 // pred_check_branch
      %284 = sbr.rel (0) target = $region41
    $region40: #{_ptnorm_train_call.2} parent=1 // pred_region
      %s286 = ssub.s32 16, 16
      %287 = vsyncadd [#allocation6], %s286
      %s289 = sshll.u32 [#allocation5], 4
      %s290 = int_to_ptr.vmem [resolvable:$true] %s289
      %292 = dma.vmem_to_hbm [thread:$0]  %s290, 16, %s7, [#allocation6]
    $region41: #{_ptnorm_train_call.2} parent=1 // pred_fallthru
      _
    // Predicated region
    $region42: #{_ptnorm_train_call.2} parent=1 // pred_check
      _
    $region43: #{_ptnorm_train_call.2} parent=1 // pred_check_branch
      %294 = sbr.rel (0) target = $region45
    $region44: #{_ptnorm_train_call.2} parent=1 // pred_region
      _
    $region45: #{_ptnorm_train_call.2} parent=1 // pred_fallthru
      _
    // Predicated region
    $region46: #{_ptnorm_train_call.2} parent=1 // pred_check
      _
    $region47: #{_ptnorm_train_call.2} parent=1 // pred_check_branch
      %296 = sbr.rel (0) target = $region49
    $region48: #{_ptnorm_train_call.2} parent=1 // pred_region
      _
    $region49: #{_ptnorm_train_call.2} parent=1 // pred_fallthru
      _
    // Predicated region
    $region50: #{_ptnorm_train_call.2} parent=1 // pred_check
      _
    $region51: #{_ptnorm_train_call.2} parent=1 // pred_check_branch
      %298 = sbr.rel (0) target = $region53
    $region52: #{_ptnorm_train_call.2} parent=1 // pred_region
      %299 = dma.done [#allocation4], 16
    $region53: #{_ptnorm_train_call.2} parent=1 // pred_fallthru
      _
    // Predicated region
    $region54: #{_ptnorm_train_call.2} parent=1 // pred_check
      _
    $region55: #{_ptnorm_train_call.2} parent=1 // pred_check_branch
      %301 = sbr.rel (0) target = $region57
    $region56: #{_ptnorm_train_call.2} parent=1 // pred_region
      %302 = dma.done [#allocation6], 16
    $region57: #{_ptnorm_train_call.2} parent=1 // pred_fallthru
      _
    %303 = vsyncpa [#allocation4], 1
    %304 = vsyncpa [#allocation6], 1

// kernel: _ptnorm_train_call.3
$region0: #{_ptnorm_train_call.3}
  #allocation0 [shape = 'u32[]', space=smem, size = 0x4, offset = 0x4, fixed_abs, tag = 'smem constant byte address 0x4 - core index']
  #allocation1 [shape = 'u32[144,128]{1,0:T(1,128)}', space=vmem, size = 0x12000, scoped, tag = 'internal scratch']
  #allocation2 [shape = 'f32[1]{0:T(128)S(6)}', space=smem, size = 0x200, scoped, tag = 'scoped memory for _ptnorm_train_call.3']
  %s0 = inlined_call_operand.vmem [shape: f32[256,32], index: 0, kind: input, shape index: {}]
  %s1 = inlined_call_operand.vmem [shape: f32[1,32], index: 1, kind: input, shape index: {}]
  %s2 = inlined_call_operand.vmem [shape: f32[1,32], index: 2, kind: input, shape index: {}]
  %s3 = inlined_call_operand.vmem [shape: f32[1,32], index: 3, kind: input, shape index: {}]
  %s4 = inlined_call_operand.vmem [shape: f32[1,32], index: 4, kind: input, shape index: {}]
  %s5 = inlined_call_operand.<no memory space> [shape: f32[1], index: 5, kind: input, shape index: {}]
  %s6 = inlined_call_operand.vmem [shape: f32[256,32], index: 6, kind: output, shape index: {}]
  %s7 = sld [smem:[#allocation0]]
  $region34: #{_ptnorm_train_call.3} parent=0
    _
  %s9 = ssub.s32 1, %s7
  %s10 = scalar_select 0, %s9, %s7
  %11 = sst [smem:[#allocation2]] %s5
  // Predicated region
  $region2: #{_ptnorm_train_call.3} parent=0 // pred_check
    _
  $region3: #{_ptnorm_train_call.3} parent=0 // pred_check_branch
    %13 = sbr.rel (0) target = $region5
  $region4: #{_ptnorm_train_call.3} parent=0 // pred_region
    _
  $region5: #{_ptnorm_train_call.3} parent=0 // pred_fallthru
    _
  // Predicated region
  $region6: #{_ptnorm_train_call.3} parent=0 // pred_check
    _
  $region7: #{_ptnorm_train_call.3} parent=0 // pred_check_branch
    %15 = sbr.rel (0) target = $region9
  $region8: #{_ptnorm_train_call.3} parent=0 // pred_region
    _
  $region9: #{_ptnorm_train_call.3} parent=0 // pred_fallthru
    _
  // Predicated region
  $region10: #{_ptnorm_train_call.3} parent=0 // pred_check
    _
  $region11: #{_ptnorm_train_call.3} parent=0 // pred_check_branch
    %17 = sbr.rel (0) target = $region13
  $region12: #{_ptnorm_train_call.3} parent=0 // pred_region
    _
  $region13: #{_ptnorm_train_call.3} parent=0 // pred_fallthru
    _
  // Predicated region
  $region14: #{_ptnorm_train_call.3} parent=0 // pred_check
    _
  $region15: #{_ptnorm_train_call.3} parent=0 // pred_check_branch
    %19 = sbr.rel (0) target = $region17
  $region16: #{_ptnorm_train_call.3} parent=0 // pred_region
    _
  $region17: #{_ptnorm_train_call.3} parent=0 // pred_fallthru
    _
  // Predicated region
  $region18: #{_ptnorm_train_call.3} parent=0 // pred_check
    _
  $region19: #{_ptnorm_train_call.3} parent=0 // pred_check_branch
    %21 = sbr.rel (0) target = $region21
  $region20: #{_ptnorm_train_call.3} parent=0 // pred_region
    _
  $region21: #{_ptnorm_train_call.3} parent=0 // pred_fallthru
    _
  // Predicated region
  $region22: #{_ptnorm_train_call.3} parent=0 // pred_check
    _
  $region23: #{_ptnorm_train_call.3} parent=0 // pred_check_branch
    %23 = sbr.rel (0) target = $region25
  $region24: #{_ptnorm_train_call.3} parent=0 // pred_region
    _
  $region25: #{_ptnorm_train_call.3} parent=0 // pred_fallthru
    _
  %v24 = vld [vmem:[%s0] sm:$0xff]
  %v25 = vld [vmem:[%s0 + $0x8] sm:$0xff]
  %v26 = vld [vmem:[%s0 + $0x10] sm:$0xff]
  %v27 = vld [vmem:[%s0 + $0x18] sm:$0xff]
  %v28 = vld [vmem:[%s0 + $0x20] sm:$0xff]
  %v29 = vld [vmem:[%s0 + $0x28] sm:$0xff]
  %v30 = vld [vmem:[%s0 + $0x30] sm:$0xff]
  %v31 = vld [vmem:[%s0 + $0x38] sm:$0xff]
  %v32 = vld [vmem:[%s0 + $0x40] sm:$0xff]
  %v33 = vld [vmem:[%s0 + $0x48] sm:$0xff]
  %v34 = vld [vmem:[%s0 + $0x50] sm:$0xff]
  %v35 = vld [vmem:[%s0 + $0x58] sm:$0xff]
  %v36 = vld [vmem:[%s0 + $0x60] sm:$0xff]
  %v37 = vld [vmem:[%s0 + $0x68] sm:$0xff]
  %v38 = vld [vmem:[%s0 + $0x70] sm:$0xff]
  %v39 = vld [vmem:[%s0 + $0x78] sm:$0xff]
  %v40 = vld [vmem:[%s0 + $0x80] sm:$0xff]
  %v41 = vld [vmem:[%s0 + $0x88] sm:$0xff]
  %v42 = vld [vmem:[%s0 + $0x90] sm:$0xff]
  %v43 = vld [vmem:[%s0 + $0x98] sm:$0xff]
  %v44 = vld [vmem:[%s0 + $0xa0] sm:$0xff]
  %v45 = vld [vmem:[%s0 + $0xa8] sm:$0xff]
  %v46 = vld [vmem:[%s0 + $0xb0] sm:$0xff]
  %v47 = vld [vmem:[%s0 + $0xb8] sm:$0xff]
  %v48 = vld [vmem:[%s0 + $0xc0] sm:$0xff]
  %v49 = vld [vmem:[%s0 + $0xc8] sm:$0xff]
  %v50 = vld [vmem:[%s0 + $0xd0] sm:$0xff]
  %v51 = vld [vmem:[%s0 + $0xd8] sm:$0xff]
  %v52 = vld [vmem:[%s0 + $0xe0] sm:$0xff]
  %v53 = vld [vmem:[%s0 + $0xe8] sm:$0xff]
  %v54 = vld [vmem:[%s0 + $0xf0] sm:$0xff]
  %v55 = vld [vmem:[%s0 + $0xf8] sm:$0xff]
  %vm56 = vcmask 261120
  %v57 = vsel %vm56, %v24, 0.0
  %58 = vadd.xlane.f32.xlu0 %v57
  %v59 = vpop.xlane.xlu0 %58
  %v60 = vsel %vm56, %v25, 0.0
  %61 = vadd.xlane.f32.xlu0 %v60
  %v62 = vpop.xlane.xlu0 %61
  %v63 = vsel %vm56, %v26, 0.0
  %64 = vadd.xlane.f32.xlu0 %v63
  %v65 = vpop.xlane.xlu0 %64
  %v66 = vsel %vm56, %v27, 0.0
  %67 = vadd.xlane.f32.xlu0 %v66
  %v68 = vpop.xlane.xlu0 %67
  %v69 = vsel %vm56, %v28, 0.0
  %70 = vadd.xlane.f32.xlu0 %v69
  %v71 = vpop.xlane.xlu0 %70
  %v72 = vsel %vm56, %v29, 0.0
  %73 = vadd.xlane.f32.xlu0 %v72
  %v74 = vpop.xlane.xlu0 %73
  %v75 = vsel %vm56, %v30, 0.0
  %76 = vadd.xlane.f32.xlu0 %v75
  %v77 = vpop.xlane.xlu0 %76
  %v78 = vsel %vm56, %v31, 0.0
  %79 = vadd.xlane.f32.xlu0 %v78
  %v80 = vpop.xlane.xlu0 %79
  %v81 = vsel %vm56, %v32, 0.0
  %82 = vadd.xlane.f32.xlu0 %v81
  %v83 = vpop.xlane.xlu0 %82
  %v84 = vsel %vm56, %v33, 0.0
  %85 = vadd.xlane.f32.xlu0 %v84
  %v86 = vpop.xlane.xlu0 %85
  %v87 = vsel %vm56, %v34, 0.0
  %88 = vadd.xlane.f32.xlu0 %v87
  %v89 = vpop.xlane.xlu0 %88
  %v90 = vsel %vm56, %v35, 0.0
  %91 = vadd.xlane.f32.xlu0 %v90
  %v92 = vpop.xlane.xlu0 %91
  %v93 = vsel %vm56, %v36, 0.0
  %94 = vadd.xlane.f32.xlu0 %v93
  %v95 = vpop.xlane.xlu0 %94
  %v96 = vsel %vm56, %v37, 0.0
  %97 = vadd.xlane.f32.xlu0 %v96
  %v98 = vpop.xlane.xlu0 %97
  %v99 = vsel %vm56, %v38, 0.0
  %100 = vadd.xlane.f32.xlu0 %v99
  %v101 = vpop.xlane.xlu0 %100
  %v102 = vsel %vm56, %v39, 0.0
  %103 = vadd.xlane.f32.xlu0 %v102
  %v104 = vpop.xlane.xlu0 %103
  %v105 = vsel %vm56, %v40, 0.0
  %106 = vadd.xlane.f32.xlu0 %v105
  %v107 = vpop.xlane.xlu0 %106
  %v108 = vsel %vm56, %v41, 0.0
  %109 = vadd.xlane.f32.xlu0 %v108
  %v110 = vpop.xlane.xlu0 %109
  %v111 = vsel %vm56, %v42, 0.0
  %112 = vadd.xlane.f32.xlu0 %v111
  %v113 = vpop.xlane.xlu0 %112
  %v114 = vsel %vm56, %v43, 0.0
  %115 = vadd.xlane.f32.xlu0 %v114
  %v116 = vpop.xlane.xlu0 %115
  %v117 = vsel %vm56, %v44, 0.0
  %118 = vadd.xlane.f32.xlu0 %v117
  %v119 = vpop.xlane.xlu0 %118
  %v120 = vsel %vm56, %v45, 0.0
  %121 = vadd.xlane.f32.xlu0 %v120
  %v122 = vpop.xlane.xlu0 %121
  %v123 = vsel %vm56, %v46, 0.0
  %124 = vadd.xlane.f32.xlu0 %v123
  %v125 = vpop.xlane.xlu0 %124
  %v126 = vsel %vm56, %v47, 0.0
  %127 = vadd.xlane.f32.xlu0 %v126
  %v128 = vpop.xlane.xlu0 %127
  %v129 = vsel %vm56, %v48, 0.0
  %130 = vadd.xlane.f32.xlu0 %v129
  %v131 = vpop.xlane.xlu0 %130
  %v132 = vsel %vm56, %v49, 0.0
  %133 = vadd.xlane.f32.xlu0 %v132
  %v134 = vpop.xlane.xlu0 %133
  %v135 = vsel %vm56, %v50, 0.0
  %136 = vadd.xlane.f32.xlu0 %v135
  %v137 = vpop.xlane.xlu0 %136
  %v138 = vsel %vm56, %v51, 0.0
  %139 = vadd.xlane.f32.xlu0 %v138
  %v140 = vpop.xlane.xlu0 %139
  %v141 = vsel %vm56, %v52, 0.0
  %142 = vadd.xlane.f32.xlu0 %v141
  %v143 = vpop.xlane.xlu0 %142
  %v144 = vsel %vm56, %v53, 0.0
  %145 = vadd.xlane.f32.xlu0 %v144
  %v146 = vpop.xlane.xlu0 %145
  %v147 = vsel %vm56, %v54, 0.0
  %148 = vadd.xlane.f32.xlu0 %v147
  %v149 = vpop.xlane.xlu0 %148
  %v150 = vsel %vm56, %v55, 0.0
  %151 = vadd.xlane.f32.xlu0 %v150
  %v152 = vpop.xlane.xlu0 %151
  %v153 = vrcp.pop 32.0
  %v154 = vmul.f32 %v59, %v153
  %v155 = vmul.f32 %v62, %v153
  %v156 = vmul.f32 %v65, %v153
  %v157 = vmul.f32 %v68, %v153
  %v158 = vmul.f32 %v71, %v153
  %v159 = vmul.f32 %v74, %v153
  %v160 = vmul.f32 %v77, %v153
  %v161 = vmul.f32 %v80, %v153
  %v162 = vmul.f32 %v83, %v153
  %v163 = vmul.f32 %v86, %v153
  %v164 = vmul.f32 %v89, %v153
  %v165 = vmul.f32 %v92, %v153
  %v166 = vmul.f32 %v95, %v153
  %v167 = vmul.f32 %v98, %v153
  %v168 = vmul.f32 %v101, %v153
  %v169 = vmul.f32 %v104, %v153
  %v170 = vmul.f32 %v107, %v153
  %v171 = vmul.f32 %v110, %v153
  %v172 = vmul.f32 %v113, %v153
  %v173 = vmul.f32 %v116, %v153
  %v174 = vmul.f32 %v119, %v153
  %v175 = vmul.f32 %v122, %v153
  %v176 = vmul.f32 %v125, %v153
  %v177 = vmul.f32 %v128, %v153
  %v178 = vmul.f32 %v131, %v153
  %v179 = vmul.f32 %v134, %v153
  %v180 = vmul.f32 %v137, %v153
  %v181 = vmul.f32 %v140, %v153
  %v182 = vmul.f32 %v143, %v153
  %v183 = vmul.f32 %v146, %v153
  %v184 = vmul.f32 %v149, %v153
  %v185 = vmul.f32 %v152, %v153
  %v186 = vsub.f32 %v24, %v154
  %v187 = vsub.f32 %v25, %v155
  %v188 = vsub.f32 %v26, %v156
  %v189 = vsub.f32 %v27, %v157
  %v190 = vsub.f32 %v28, %v158
  %v191 = vsub.f32 %v29, %v159
  %v192 = vsub.f32 %v30, %v160
  %v193 = vsub.f32 %v31, %v161
  %v194 = vsub.f32 %v32, %v162
  %v195 = vsub.f32 %v33, %v163
  %v196 = vsub.f32 %v34, %v164
  %v197 = vsub.f32 %v35, %v165
  %v198 = vsub.f32 %v36, %v166
  %v199 = vsub.f32 %v37, %v167
  %v200 = vsub.f32 %v38, %v168
  %v201 = vsub.f32 %v39, %v169
  %v202 = vsub.f32 %v40, %v170
  %v203 = vsub.f32 %v41, %v171
  %v204 = vsub.f32 %v42, %v172
  %v205 = vsub.f32 %v43, %v173
  %v206 = vsub.f32 %v44, %v174
  %v207 = vsub.f32 %v45, %v175
  %v208 = vsub.f32 %v46, %v176
  %v209 = vsub.f32 %v47, %v177
  %v210 = vsub.f32 %v48, %v178
  %v211 = vsub.f32 %v49, %v179
  %v212 = vsub.f32 %v50, %v180
  %v213 = vsub.f32 %v51, %v181
  %v214 = vsub.f32 %v52, %v182
  %v215 = vsub.f32 %v53, %v183
  %v216 = vsub.f32 %v54, %v184
  %v217 = vsub.f32 %v55, %v185
  %v218 = vmul.f32 %v186, %v186
  %v219 = vmul.f32 %v187, %v187
  %v220 = vmul.f32 %v188, %v188
  %v221 = vmul.f32 %v189, %v189
  %v222 = vmul.f32 %v190, %v190
  %v223 = vmul.f32 %v191, %v191
  %v224 = vmul.f32 %v192, %v192
  %v225 = vmul.f32 %v193, %v193
  %v226 = vmul.f32 %v194, %v194
  %v227 = vmul.f32 %v195, %v195
  %v228 = vmul.f32 %v196, %v196
  %v229 = vmul.f32 %v197, %v197
  %v230 = vmul.f32 %v198, %v198
  %v231 = vmul.f32 %v199, %v199
  %v232 = vmul.f32 %v200, %v200
  %v233 = vmul.f32 %v201, %v201
  %v234 = vmul.f32 %v202, %v202
  %v235 = vmul.f32 %v203, %v203
  %v236 = vmul.f32 %v204, %v204
  %v237 = vmul.f32 %v205, %v205
  %v238 = vmul.f32 %v206, %v206
  %v239 = vmul.f32 %v207, %v207
  %v240 = vmul.f32 %v208, %v208
  %v241 = vmul.f32 %v209, %v209
  %v242 = vmul.f32 %v210, %v210
  %v243 = vmul.f32 %v211, %v211
  %v244 = vmul.f32 %v212, %v212
  %v245 = vmul.f32 %v213, %v213
  %v246 = vmul.f32 %v214, %v214
  %v247 = vmul.f32 %v215, %v215
  %v248 = vmul.f32 %v216, %v216
  %v249 = vmul.f32 %v217, %v217
  %v250 = vsel %vm56, %v218, 0.0
  %251 = vadd.xlane.f32.xlu0 %v250
  %v252 = vpop.xlane.xlu0 %251
  %v253 = vsel %vm56, %v219, 0.0
  %254 = vadd.xlane.f32.xlu0 %v253
  %v255 = vpop.xlane.xlu0 %254
  %v256 = vsel %vm56, %v220, 0.0
  %257 = vadd.xlane.f32.xlu0 %v256
  %v258 = vpop.xlane.xlu0 %257
  %v259 = vsel %vm56, %v221, 0.0
  %260 = vadd.xlane.f32.xlu0 %v259
  %v261 = vpop.xlane.xlu0 %260
  %v262 = vsel %vm56, %v222, 0.0
  %263 = vadd.xlane.f32.xlu0 %v262
  %v264 = vpop.xlane.xlu0 %263
  %v265 = vsel %vm56, %v223, 0.0
  %266 = vadd.xlane.f32.xlu0 %v265
  %v267 = vpop.xlane.xlu0 %266
  %v268 = vsel %vm56, %v224, 0.0
  %269 = vadd.xlane.f32.xlu0 %v268
  %v270 = vpop.xlane.xlu0 %269
  %v271 = vsel %vm56, %v225, 0.0
  %272 = vadd.xlane.f32.xlu0 %v271
  %v273 = vpop.xlane.xlu0 %272
  %v274 = vsel %vm56, %v226, 0.0
  %275 = vadd.xlane.f32.xlu0 %v274
  %v276 = vpop.xlane.xlu0 %275
  %v277 = vsel %vm56, %v227, 0.0
  %278 = vadd.xlane.f32.xlu0 %v277
  %v279 = vpop.xlane.xlu0 %278
  %v280 = vsel %vm56, %v228, 0.0
  %281 = vadd.xlane.f32.xlu0 %v280
  %v282 = vpop.xlane.xlu0 %281
  %v283 = vsel %vm56, %v229, 0.0
  %284 = vadd.xlane.f32.xlu0 %v283
  %v285 = vpop.xlane.xlu0 %284
  %v286 = vsel %vm56, %v230, 0.0
  %287 = vadd.xlane.f32.xlu0 %v286
  %v288 = vpop.xlane.xlu0 %287
  %v289 = vsel %vm56, %v231, 0.0
  %290 = vadd.xlane.f32.xlu0 %v289
  %v291 = vpop.xlane.xlu0 %290
  %v292 = vsel %vm56, %v232, 0.0
  %293 = vadd.xlane.f32.xlu0 %v292
  %v294 = vpop.xlane.xlu0 %293
  %v295 = vsel %vm56, %v233, 0.0
  %296 = vadd.xlane.f32.xlu0 %v295
  %v297 = vpop.xlane.xlu0 %296
  %v298 = vsel %vm56, %v234, 0.0
  %299 = vadd.xlane.f32.xlu0 %v298
  %v300 = vpop.xlane.xlu0 %299
  %v301 = vsel %vm56, %v235, 0.0
  %302 = vadd.xlane.f32.xlu0 %v301
  %v303 = vpop.xlane.xlu0 %302
  %v304 = vsel %vm56, %v236, 0.0
  %305 = vadd.xlane.f32.xlu0 %v304
  %v306 = vpop.xlane.xlu0 %305
  %v307 = vsel %vm56, %v237, 0.0
  %308 = vadd.xlane.f32.xlu0 %v307
  %v309 = vpop.xlane.xlu0 %308
  %v310 = vsel %vm56, %v238, 0.0
  %311 = vadd.xlane.f32.xlu0 %v310
  %v312 = vpop.xlane.xlu0 %311
  %v313 = vsel %vm56, %v239, 0.0
  %314 = vadd.xlane.f32.xlu0 %v313
  %v315 = vpop.xlane.xlu0 %314
  %v316 = vsel %vm56, %v240, 0.0
  %317 = vadd.xlane.f32.xlu0 %v316
  %v318 = vpop.xlane.xlu0 %317
  %v319 = vsel %vm56, %v241, 0.0
  %320 = vadd.xlane.f32.xlu0 %v319
  %v321 = vpop.xlane.xlu0 %320
  %v322 = vsel %vm56, %v242, 0.0
  %323 = vadd.xlane.f32.xlu0 %v322
  %v324 = vpop.xlane.xlu0 %323
  %v325 = vsel %vm56, %v243, 0.0
  %326 = vadd.xlane.f32.xlu0 %v325
  %v327 = vpop.xlane.xlu0 %326
  %v328 = vsel %vm56, %v244, 0.0
  %329 = vadd.xlane.f32.xlu0 %v328
  %v330 = vpop.xlane.xlu0 %329
  %v331 = vsel %vm56, %v245, 0.0
  %332 = vadd.xlane.f32.xlu0 %v331
  %v333 = vpop.xlane.xlu0 %332
  %v334 = vsel %vm56, %v246, 0.0
  %335 = vadd.xlane.f32.xlu0 %v334
  %v336 = vpop.xlane.xlu0 %335
  %v337 = vsel %vm56, %v247, 0.0
  %338 = vadd.xlane.f32.xlu0 %v337
  %v339 = vpop.xlane.xlu0 %338
  %v340 = vsel %vm56, %v248, 0.0
  %341 = vadd.xlane.f32.xlu0 %v340
  %v342 = vpop.xlane.xlu0 %341
  %v343 = vsel %vm56, %v249, 0.0
  %344 = vadd.xlane.f32.xlu0 %v343
  %v345 = vpop.xlane.xlu0 %344
  %v346 = vmul.f32 %v252, %v153
  %v347 = vmul.f32 %v255, %v153
  %v348 = vmul.f32 %v258, %v153
  %v349 = vmul.f32 %v261, %v153
  %v350 = vmul.f32 %v264, %v153
  %v351 = vmul.f32 %v267, %v153
  %v352 = vmul.f32 %v270, %v153
  %v353 = vmul.f32 %v273, %v153
  %v354 = vmul.f32 %v276, %v153
  %v355 = vmul.f32 %v279, %v153
  %v356 = vmul.f32 %v282, %v153
  %v357 = vmul.f32 %v285, %v153
  %v358 = vmul.f32 %v288, %v153
  %v359 = vmul.f32 %v291, %v153
  %v360 = vmul.f32 %v294, %v153
  %v361 = vmul.f32 %v297, %v153
  %v362 = vmul.f32 %v300, %v153
  %v363 = vmul.f32 %v303, %v153
  %v364 = vmul.f32 %v306, %v153
  %v365 = vmul.f32 %v309, %v153
  %v366 = vmul.f32 %v312, %v153
  %v367 = vmul.f32 %v315, %v153
  %v368 = vmul.f32 %v318, %v153
  %v369 = vmul.f32 %v321, %v153
  %v370 = vmul.f32 %v324, %v153
  %v371 = vmul.f32 %v327, %v153
  %v372 = vmul.f32 %v330, %v153
  %v373 = vmul.f32 %v333, %v153
  %v374 = vmul.f32 %v336, %v153
  %v375 = vmul.f32 %v339, %v153
  %v376 = vmul.f32 %v342, %v153
  %v377 = vmul.f32 %v345, %v153
  %v378 = vadd.f32 %v346, 1e-05
  %v379 = vadd.f32 %v347, 1e-05
  %v380 = vadd.f32 %v348, 1e-05
  %v381 = vadd.f32 %v349, 1e-05
  %v382 = vadd.f32 %v350, 1e-05
  %v383 = vadd.f32 %v351, 1e-05
  %v384 = vadd.f32 %v352, 1e-05
  %v385 = vadd.f32 %v353, 1e-05
  %v386 = vadd.f32 %v354, 1e-05
  %v387 = vadd.f32 %v355, 1e-05
  %v388 = vadd.f32 %v356, 1e-05
  %v389 = vadd.f32 %v357, 1e-05
  %v390 = vadd.f32 %v358, 1e-05
  %v391 = vadd.f32 %v359, 1e-05
  %v392 = vadd.f32 %v360, 1e-05
  %v393 = vadd.f32 %v361, 1e-05
  %v394 = vadd.f32 %v362, 1e-05
  %v395 = vadd.f32 %v363, 1e-05
  %v396 = vadd.f32 %v364, 1e-05
  %v397 = vadd.f32 %v365, 1e-05
  %v398 = vadd.f32 %v366, 1e-05
  %v399 = vadd.f32 %v367, 1e-05
  %v400 = vadd.f32 %v368, 1e-05
  %v401 = vadd.f32 %v369, 1e-05
  %v402 = vadd.f32 %v370, 1e-05
  %v403 = vadd.f32 %v371, 1e-05
  %v404 = vadd.f32 %v372, 1e-05
  %v405 = vadd.f32 %v373, 1e-05
  %v406 = vadd.f32 %v374, 1e-05
  %v407 = vadd.f32 %v375, 1e-05
  %v408 = vadd.f32 %v376, 1e-05
  %v409 = vadd.f32 %v377, 1e-05
  %v410 = vrsqrt.pop %v378
  %v411 = vrsqrt.pop %v379
  %v412 = vrsqrt.pop %v380
  %v413 = vrsqrt.pop %v381
  %v414 = vrsqrt.pop %v382
  %v415 = vrsqrt.pop %v383
  %v416 = vrsqrt.pop %v384
  %v417 = vrsqrt.pop %v385
  %v418 = vrsqrt.pop %v386
  %v419 = vrsqrt.pop %v387
  %v420 = vrsqrt.pop %v388
  %v421 = vrsqrt.pop %v389
  %v422 = vrsqrt.pop %v390
  %v423 = vrsqrt.pop %v391
  %v424 = vrsqrt.pop %v392
  %v425 = vrsqrt.pop %v393
  %v426 = vrsqrt.pop %v394
  %v427 = vrsqrt.pop %v395
  %v428 = vrsqrt.pop %v396
  %v429 = vrsqrt.pop %v397
  %v430 = vrsqrt.pop %v398
  %v431 = vrsqrt.pop %v399
  %v432 = vrsqrt.pop %v400
  %v433 = vrsqrt.pop %v401
  %v434 = vrsqrt.pop %v402
  %v435 = vrsqrt.pop %v403
  %v436 = vrsqrt.pop %v404
  %v437 = vrsqrt.pop %v405
  %v438 = vrsqrt.pop %v406
  %v439 = vrsqrt.pop %v407
  %v440 = vrsqrt.pop %v408
  %v441 = vrsqrt.pop %v409
  %v442 = vmul.f32 %v186, %v410
  %v443 = vmul.f32 %v187, %v411
  %v444 = vmul.f32 %v188, %v412
  %v445 = vmul.f32 %v189, %v413
  %v446 = vmul.f32 %v190, %v414
  %v447 = vmul.f32 %v191, %v415
  %v448 = vmul.f32 %v192, %v416
  %v449 = vmul.f32 %v193, %v417
  %v450 = vmul.f32 %v194, %v418
  %v451 = vmul.f32 %v195, %v419
  %v452 = vmul.f32 %v196, %v420
  %v453 = vmul.f32 %v197, %v421
  %v454 = vmul.f32 %v198, %v422
  %v455 = vmul.f32 %v199, %v423
  %v456 = vmul.f32 %v200, %v424
  %v457 = vmul.f32 %v201, %v425
  %v458 = vmul.f32 %v202, %v426
  %v459 = vmul.f32 %v203, %v427
  %v460 = vmul.f32 %v204, %v428
  %v461 = vmul.f32 %v205, %v429
  %v462 = vmul.f32 %v206, %v430
  %v463 = vmul.f32 %v207, %v431
  %v464 = vmul.f32 %v208, %v432
  %v465 = vmul.f32 %v209, %v433
  %v466 = vmul.f32 %v210, %v434
  %v467 = vmul.f32 %v211, %v435
  %v468 = vmul.f32 %v212, %v436
  %v469 = vmul.f32 %v213, %v437
  %v470 = vmul.f32 %v214, %v438
  %v471 = vmul.f32 %v215, %v439
  %v472 = vmul.f32 %v216, %v440
  %v473 = vmul.f32 %v217, %v441
  %v474 = vld [vmem:[%s1] sm:$0x1]
  %v476 = vlaneseq
  %v477 = vshrl.u32 %v476, 7
  %v478 = vsub.s32 0, %v477
  %v479 = vrot.slane %v474, %v478
  %v481 = vmul.f32 %v442, %v479
  %v482 = vmul.f32 %v443, %v479
  %v483 = vmul.f32 %v444, %v479
  %v484 = vmul.f32 %v445, %v479
  %v485 = vmul.f32 %v446, %v479
  %v486 = vmul.f32 %v447, %v479
  %v487 = vmul.f32 %v448, %v479
  %v488 = vmul.f32 %v449, %v479
  %v489 = vmul.f32 %v450, %v479
  %v490 = vmul.f32 %v451, %v479
  %v491 = vmul.f32 %v452, %v479
  %v492 = vmul.f32 %v453, %v479
  %v493 = vmul.f32 %v454, %v479
  %v494 = vmul.f32 %v455, %v479
  %v495 = vmul.f32 %v456, %v479
  %v496 = vmul.f32 %v457, %v479
  %v497 = vmul.f32 %v458, %v479
  %v498 = vmul.f32 %v459, %v479
  %v499 = vmul.f32 %v460, %v479
  %v500 = vmul.f32 %v461, %v479
  %v501 = vmul.f32 %v462, %v479
  %v502 = vmul.f32 %v463, %v479
  %v503 = vmul.f32 %v464, %v479
  %v504 = vmul.f32 %v465, %v479
  %v505 = vmul.f32 %v466, %v479
  %v506 = vmul.f32 %v467, %v479
  %v507 = vmul.f32 %v468, %v479
  %v508 = vmul.f32 %v469, %v479
  %v509 = vmul.f32 %v470, %v479
  %v510 = vmul.f32 %v471, %v479
  %v511 = vmul.f32 %v472, %v479
  %v512 = vmul.f32 %v473, %v479
  %v513 = vld [vmem:[%s2] sm:$0x1]
  %v515 = vlaneseq
  %v516 = vshrl.u32 %v515, 7
  %v517 = vsub.s32 0, %v516
  %v518 = vrot.slane %v513, %v517
  %v520 = vadd.f32 %v481, %v518
  %v521 = vadd.f32 %v482, %v518
  %v522 = vadd.f32 %v483, %v518
  %v523 = vadd.f32 %v484, %v518
  %v524 = vadd.f32 %v485, %v518
  %v525 = vadd.f32 %v486, %v518
  %v526 = vadd.f32 %v487, %v518
  %v527 = vadd.f32 %v488, %v518
  %v528 = vadd.f32 %v489, %v518
  %v529 = vadd.f32 %v490, %v518
  %v530 = vadd.f32 %v491, %v518
  %v531 = vadd.f32 %v492, %v518
  %v532 = vadd.f32 %v493, %v518
  %v533 = vadd.f32 %v494, %v518
  %v534 = vadd.f32 %v495, %v518
  %v535 = vadd.f32 %v496, %v518
  %v536 = vadd.f32 %v497, %v518
  %v537 = vadd.f32 %v498, %v518
  %v538 = vadd.f32 %v499, %v518
  %v539 = vadd.f32 %v500, %v518
  %v540 = vadd.f32 %v501, %v518
  %v541 = vadd.f32 %v502, %v518
  %v542 = vadd.f32 %v503, %v518
  %v543 = vadd.f32 %v504, %v518
  %v544 = vadd.f32 %v505, %v518
  %v545 = vadd.f32 %v506, %v518
  %v546 = vadd.f32 %v507, %v518
  %v547 = vadd.f32 %v508, %v518
  %v548 = vadd.f32 %v509, %v518
  %v549 = vadd.f32 %v510, %v518
  %v550 = vadd.f32 %v511, %v518
  %v551 = vadd.f32 %v512, %v518
  %v552 = vld [vmem:[%s3] sm:$0x1]
  %v554 = vlaneseq
  %v555 = vshrl.u32 %v554, 7
  %v556 = vsub.s32 0, %v555
  %v557 = vrot.slane %v552, %v556
  %v559 = vmul.f32 %v24, %v557
  %v560 = vmul.f32 %v25, %v557
  %v561 = vmul.f32 %v26, %v557
  %v562 = vmul.f32 %v27, %v557
  %v563 = vmul.f32 %v28, %v557
  %v564 = vmul.f32 %v29, %v557
  %v565 = vmul.f32 %v30, %v557
  %v566 = vmul.f32 %v31, %v557
  %v567 = vmul.f32 %v32, %v557
  %v568 = vmul.f32 %v33, %v557
  %v569 = vmul.f32 %v34, %v557
  %v570 = vmul.f32 %v35, %v557
  %v571 = vmul.f32 %v36, %v557
  %v572 = vmul.f32 %v37, %v557
  %v573 = vmul.f32 %v38, %v557
  %v574 = vmul.f32 %v39, %v557
  %v575 = vmul.f32 %v40, %v557
  %v576 = vmul.f32 %v41, %v557
  %v577 = vmul.f32 %v42, %v557
  %v578 = vmul.f32 %v43, %v557
  %v579 = vmul.f32 %v44, %v557
  %v580 = vmul.f32 %v45, %v557
  %v581 = vmul.f32 %v46, %v557
  %v582 = vmul.f32 %v47, %v557
  %v583 = vmul.f32 %v48, %v557
  %v584 = vmul.f32 %v49, %v557
  %v585 = vmul.f32 %v50, %v557
  %v586 = vmul.f32 %v51, %v557
  %v587 = vmul.f32 %v52, %v557
  %v588 = vmul.f32 %v53, %v557
  %v589 = vmul.f32 %v54, %v557
  %v590 = vmul.f32 %v55, %v557
  %v591 = vld [vmem:[%s4] sm:$0x1]
  %v593 = vlaneseq
  %v594 = vshrl.u32 %v593, 7
  %v595 = vsub.s32 0, %v594
  %v596 = vrot.slane %v591, %v595
  %v598 = vadd.f32 %v559, %v596
  %v599 = vadd.f32 %v560, %v596
  %v600 = vadd.f32 %v561, %v596
  %v601 = vadd.f32 %v562, %v596
  %v602 = vadd.f32 %v563, %v596
  %v603 = vadd.f32 %v564, %v596
  %v604 = vadd.f32 %v565, %v596
  %v605 = vadd.f32 %v566, %v596
  %v606 = vadd.f32 %v567, %v596
  %v607 = vadd.f32 %v568, %v596
  %v608 = vadd.f32 %v569, %v596
  %v609 = vadd.f32 %v570, %v596
  %v610 = vadd.f32 %v571, %v596
  %v611 = vadd.f32 %v572, %v596
  %v612 = vadd.f32 %v573, %v596
  %v613 = vadd.f32 %v574, %v596
  %v614 = vadd.f32 %v575, %v596
  %v615 = vadd.f32 %v576, %v596
  %v616 = vadd.f32 %v577, %v596
  %v617 = vadd.f32 %v578, %v596
  %v618 = vadd.f32 %v579, %v596
  %v619 = vadd.f32 %v580, %v596
  %v620 = vadd.f32 %v581, %v596
  %v621 = vadd.f32 %v582, %v596
  %v622 = vadd.f32 %v583, %v596
  %v623 = vadd.f32 %v584, %v596
  %v624 = vadd.f32 %v585, %v596
  %v625 = vadd.f32 %v586, %v596
  %v626 = vadd.f32 %v587, %v596
  %v627 = vadd.f32 %v588, %v596
  %v628 = vadd.f32 %v589, %v596
  %v629 = vadd.f32 %v590, %v596
  %s630 = sld [smem:[#allocation2]]
  %v631 = vsub.f32 %v520, %v598
  %v632 = vsub.f32 %v521, %v599
  %v633 = vsub.f32 %v522, %v600
  %v634 = vsub.f32 %v523, %v601
  %v635 = vsub.f32 %v524, %v602
  %v636 = vsub.f32 %v525, %v603
  %v637 = vsub.f32 %v526, %v604
  %v638 = vsub.f32 %v527, %v605
  %v639 = vsub.f32 %v528, %v606
  %v640 = vsub.f32 %v529, %v607
  %v641 = vsub.f32 %v530, %v608
  %v642 = vsub.f32 %v531, %v609
  %v643 = vsub.f32 %v532, %v610
  %v644 = vsub.f32 %v533, %v611
  %v645 = vsub.f32 %v534, %v612
  %v646 = vsub.f32 %v535, %v613
  %v647 = vsub.f32 %v536, %v614
  %v648 = vsub.f32 %v537, %v615
  %v649 = vsub.f32 %v538, %v616
  %v650 = vsub.f32 %v539, %v617
  %v651 = vsub.f32 %v540, %v618
  %v652 = vsub.f32 %v541, %v619
  %v653 = vsub.f32 %v542, %v620
  %v654 = vsub.f32 %v543, %v621
  %v655 = vsub.f32 %v544, %v622
  %v656 = vsub.f32 %v545, %v623
  %v657 = vsub.f32 %v546, %v624
  %v658 = vsub.f32 %v547, %v625
  %v659 = vsub.f32 %v548, %v626
  %v660 = vsub.f32 %v549, %v627
  %v661 = vsub.f32 %v550, %v628
  %v662 = vsub.f32 %v551, %v629
  %v663 = vstv %s630
  %v664 = vmul.f32 %v663, %v631
  %v665 = vmul.f32 %v663, %v632
  %v666 = vmul.f32 %v663, %v633
  %v667 = vmul.f32 %v663, %v634
  %v668 = vmul.f32 %v663, %v635
  %v669 = vmul.f32 %v663, %v636
  %v670 = vmul.f32 %v663, %v637
  %v671 = vmul.f32 %v663, %v638
  %v672 = vmul.f32 %v663, %v639
  %v673 = vmul.f32 %v663, %v640
  %v674 = vmul.f32 %v663, %v641
  %v675 = vmul.f32 %v663, %v642
  %v676 = vmul.f32 %v663, %v643
  %v677 = vmul.f32 %v663, %v644
  %v678 = vmul.f32 %v663, %v645
  %v679 = vmul.f32 %v663, %v646
  %v680 = vmul.f32 %v663, %v647
  %v681 = vmul.f32 %v663, %v648
  %v682 = vmul.f32 %v663, %v649
  %v683 = vmul.f32 %v663, %v650
  %v684 = vmul.f32 %v663, %v651
  %v685 = vmul.f32 %v663, %v652
  %v686 = vmul.f32 %v663, %v653
  %v687 = vmul.f32 %v663, %v654
  %v688 = vmul.f32 %v663, %v655
  %v689 = vmul.f32 %v663, %v656
  %v690 = vmul.f32 %v663, %v657
  %v691 = vmul.f32 %v663, %v658
  %v692 = vmul.f32 %v663, %v659
  %v693 = vmul.f32 %v663, %v660
  %v694 = vmul.f32 %v663, %v661
  %v695 = vmul.f32 %v663, %v662
  %v696 = vadd.f32 %v598, %v664
  %v697 = vadd.f32 %v599, %v665
  %v698 = vadd.f32 %v600, %v666
  %v699 = vadd.f32 %v601, %v667
  %v700 = vadd.f32 %v602, %v668
  %v701 = vadd.f32 %v603, %v669
  %v702 = vadd.f32 %v604, %v670
  %v703 = vadd.f32 %v605, %v671
  %v704 = vadd.f32 %v606, %v672
  %v705 = vadd.f32 %v607, %v673
  %v706 = vadd.f32 %v608, %v674
  %v707 = vadd.f32 %v609, %v675
  %v708 = vadd.f32 %v610, %v676
  %v709 = vadd.f32 %v611, %v677
  %v710 = vadd.f32 %v612, %v678
  %v711 = vadd.f32 %v613, %v679
  %v712 = vadd.f32 %v614, %v680
  %v713 = vadd.f32 %v615, %v681
  %v714 = vadd.f32 %v616, %v682
  %v715 = vadd.f32 %v617, %v683
  %v716 = vadd.f32 %v618, %v684
  %v717 = vadd.f32 %v619, %v685
  %v718 = vadd.f32 %v620, %v686
  %v719 = vadd.f32 %v621, %v687
  %v720 = vadd.f32 %v622, %v688
  %v721 = vadd.f32 %v623, %v689
  %v722 = vadd.f32 %v624, %v690
  %v723 = vadd.f32 %v625, %v691
  %v724 = vadd.f32 %v626, %v692
  %v725 = vadd.f32 %v627, %v693
  %v726 = vadd.f32 %v628, %v694
  %v727 = vadd.f32 %v629, %v695
  %728 = vst.msk [vmem:[%s6] sm:$0xff] %vm56, %v696
  %729 = vst.msk [vmem:[%s6 + $0x8] sm:$0xff] %vm56, %v697
  %730 = vst.msk [vmem:[%s6 + $0x10] sm:$0xff] %vm56, %v698
  %731 = vst.msk [vmem:[%s6 + $0x18] sm:$0xff] %vm56, %v699
  %732 = vst.msk [vmem:[%s6 + $0x20] sm:$0xff] %vm56, %v700
  %733 = vst.msk [vmem:[%s6 + $0x28] sm:$0xff] %vm56, %v701
  %734 = vst.msk [vmem:[%s6 + $0x30] sm:$0xff] %vm56, %v702
  %735 = vst.msk [vmem:[%s6 + $0x38] sm:$0xff] %vm56, %v703
  %736 = vst.msk [vmem:[%s6 + $0x40] sm:$0xff] %vm56, %v704
  %737 = vst.msk [vmem:[%s6 + $0x48] sm:$0xff] %vm56, %v705
  %738 = vst.msk [vmem:[%s6 + $0x50] sm:$0xff] %vm56, %v706
  %739 = vst.msk [vmem:[%s6 + $0x58] sm:$0xff] %vm56, %v707
  %740 = vst.msk [vmem:[%s6 + $0x60] sm:$0xff] %vm56, %v708
  %741 = vst.msk [vmem:[%s6 + $0x68] sm:$0xff] %vm56, %v709
  %742 = vst.msk [vmem:[%s6 + $0x70] sm:$0xff] %vm56, %v710
  %743 = vst.msk [vmem:[%s6 + $0x78] sm:$0xff] %vm56, %v711
  %744 = vst.msk [vmem:[%s6 + $0x80] sm:$0xff] %vm56, %v712
  %745 = vst.msk [vmem:[%s6 + $0x88] sm:$0xff] %vm56, %v713
  %746 = vst.msk [vmem:[%s6 + $0x90] sm:$0xff] %vm56, %v714
  %747 = vst.msk [vmem:[%s6 + $0x98] sm:$0xff] %vm56, %v715
  %748 = vst.msk [vmem:[%s6 + $0xa0] sm:$0xff] %vm56, %v716
  %749 = vst.msk [vmem:[%s6 + $0xa8] sm:$0xff] %vm56, %v717
  %750 = vst.msk [vmem:[%s6 + $0xb0] sm:$0xff] %vm56, %v718
  %751 = vst.msk [vmem:[%s6 + $0xb8] sm:$0xff] %vm56, %v719
  %752 = vst.msk [vmem:[%s6 + $0xc0] sm:$0xff] %vm56, %v720
  %753 = vst.msk [vmem:[%s6 + $0xc8] sm:$0xff] %vm56, %v721
  %754 = vst.msk [vmem:[%s6 + $0xd0] sm:$0xff] %vm56, %v722
  %755 = vst.msk [vmem:[%s6 + $0xd8] sm:$0xff] %vm56, %v723
  %756 = vst.msk [vmem:[%s6 + $0xe0] sm:$0xff] %vm56, %v724
  %757 = vst.msk [vmem:[%s6 + $0xe8] sm:$0xff] %vm56, %v725
  %758 = vst.msk [vmem:[%s6 + $0xf0] sm:$0xff] %vm56, %v726
  %759 = vst.msk [vmem:[%s6 + $0xf8] sm:$0xff] %vm56, %v727
  // Predicated region
  $region26: #{_ptnorm_train_call.3} parent=0 // pred_check
    _
  $region27: #{_ptnorm_train_call.3} parent=0 // pred_check_branch
    %761 = sbr.rel (0) target = $region29
  $region28: #{_ptnorm_train_call.3} parent=0 // pred_region
    _
  $region29: #{_ptnorm_train_call.3} parent=0 // pred_fallthru
    _
  // Predicated region
  $region30: #{_ptnorm_train_call.3} parent=0 // pred_check
    _
  $region31: #{_ptnorm_train_call.3} parent=0 // pred_check_branch
    %763 = sbr.rel (0) target = $region33
  $region32: #{_ptnorm_train_call.3} parent=0 // pred_region
    _
  $region33: #{_ptnorm_train_call.3} parent=0 // pred_fallthru
    _

</llo_original>
